<compile_context>
chip_gen: v7x
topology: tpu7x:2x2x1
jax: 0.10.0
libtpu: 0.0.40
codegen_flags: <defaults>
</compile_context>

<pallas_src>
import functools

import jax
import jax.numpy as jnp
from jax import lax
from jax.experimental import pallas as pl
from jax.experimental.pallas import tpu as pltpu


# --------------------------------------------------------------------------- #
# Kernels
# --------------------------------------------------------------------------- #
def _attend_and_pool(sim, img, out_ref, n_valid):
    """sim: (TB, N_pad, T) f32, img: (TB, N_pad, D_img) compute dtype."""
    n_pad = sim.shape[1]

    # torch.topk(k=1, dim=-1).values  ==  max over T (lane-axis reduction).
    s = jnp.max(sim, axis=-1)                                   # (TB, N_pad) f32

    if n_valid < n_pad:  # static: only when N was padded to a multiple of 8
        col = lax.broadcasted_iota(jnp.int32, s.shape, 1)
        s = jnp.where(col < n_valid, s, -1e30)

    # F.softmax over the region axis N (last/lane axis here), stabilized.
    mx = jnp.max(s, axis=-1, keepdims=True)
    e = jnp.exp(s - mx)
    denom = jnp.sum(e, axis=-1, keepdims=True)
    if img.dtype == jnp.bfloat16:
        att = e * pl.reciprocal(denom, approx=True)             # EUP slot (free)
    else:
        att = e / denom                                         # exact f32 path
    # (TB, N_pad) f32

    # Weighted region sum on the MXU: (TB,1,N) x (TB,N,D_img) -> (TB,1,D_img).
    out3 = lax.dot_general(
        att.astype(img.dtype)[:, None, :], img,
        dimension_numbers=(((2,), (1,)), ((0,), (0,))),
        preferred_element_type=jnp.float32,
    )
    out_ref[...] = out3[:, 0, :].astype(out_ref.dtype)


def _va_kernel_fused(img_ref, h1_ref, m_ref, out_ref, *, n_valid):
    """similarity = img @ (W_img.T @ W_lstm) @ h1.T  (used when D_lstm <= H)."""
    tb, n_pad, d_img = img_ref.shape
    d_lstm = m_ref.shape[1]

    img = img_ref[...]                                          # (TB, N_pad, D_img)
    h1 = h1_ref[...]                                            # (TB, T,  D_lstm)

    # One big 2-D MXU matmul; the reshape is layout-free because the wrapper
    # guarantees tb % 8 == 0 and n_pad % 8 == 0.
    proj = jnp.dot(img.reshape(tb * n_pad, d_img), m_ref[...],
                   preferred_element_type=jnp.float32)
    proj = proj.reshape(tb, n_pad, d_lstm).astype(img.dtype)

    # similarity[b] = proj[b] @ h1[b].T  (batched, no explicit transpose).
    sim = lax.dot_general(
        proj, h1,
        dimension_numbers=(((2,), (2,)), ((0,), (0,))),
        preferred_element_type=jnp.float32,
    )                                                           # (TB, N_pad, T)
    _attend_and_pool(sim, img, out_ref, n_valid)


def _va_kernel_unfused(img_ref, h1_ref, wi_t_ref, wl_t_ref, out_ref, *, n_valid):
    """Original two-projection form (used when H < D_lstm)."""
    tb, n_pad, d_img = img_ref.shape
    _, t, d_lstm = h1_ref.shape
    h = wi_t_ref.shape[1]

    img = img_ref[...]                                          # (TB, N_pad, D_img)
    h1 = h1_ref[...]                                            # (TB, T, D_lstm)

    emb_img = jnp.dot(img.reshape(tb * n_pad, d_img), wi_t_ref[...],
                      preferred_element_type=jnp.float32)
    emb_img = emb_img.reshape(tb, n_pad, h).astype(img.dtype)   # (TB, N_pad, H)

    # TODO(synk): if T % 8 != 0 this reshape may relayout; emb_lstm is small.
    emb_lstm = jnp.dot(h1.reshape(tb * t, d_lstm), wl_t_ref[...],
                       preferred_element_type=jnp.float32)
    emb_lstm = emb_lstm.reshape(tb, t, h).astype(h1.dtype)      # (TB, T, H)

    sim = lax.dot_general(
        emb_img, emb_lstm,
        dimension_numbers=(((2,), (2,)), ((0,), (0,))),
        preferred_element_type=jnp.float32,
    )                                                           # (TB, N_pad, T)
    _attend_and_pool(sim, img, out_ref, n_valid)


# --------------------------------------------------------------------------- #
# Wrapper
# --------------------------------------------------------------------------- #
def _round_up(x, m):
    return ((x + m - 1) // m) * m


def _round_down8(x):
    return max(8, (int(x) // 8) * 8)


def _footprint_bytes(tb, n_pad, t, d_img, d_lstm, h, fuse, bpe):
    """Approximate per-grid-step VMEM footprint (2x-buffered blocks + f32 temps)."""
    inner = d_lstm if fuse else h
    fp = 2 * tb * n_pad * d_img * bpe           # image_feats block (double buffered)
    fp += 2 * tb * t * d_lstm * bpe             # h1 block (double buffered)
    if fuse:
        fp += 2 * d_img * d_lstm * bpe          # M (constant index map, still 2x)
    else:
        fp += 2 * h * (d_img + d_lstm) * bpe    # W_img.T / W_lstm.T (2x)
        fp += 2 * tb * t * h * 4                # emb_lstm f32 (+ cast copy)
    fp += 2 * tb * d_img * 4                    # out block f32 (double buffered)
    fp += 2 * tb * n_pad * inner * 4            # proj / emb_img f32 (+ cast copy)
    fp += tb * n_pad * max(t, 8) * 4            # sim f32
    fp += 8 * tb * n_pad * 4                    # s / e / att / iota scratch
    return fp


def visual_attention(image_feats, h1, w_img, w_lstm, *, tb=None, use_bf16=True):
    """image_feats: (B, N, D_img); h1: (B, T, D_lstm);
    w_img: (H, D_img), w_lstm: (H, D_lstm) (PyTorch nn.Linear weight layout).
    Returns (B, D_img) float32."""
    image_feats = jnp.asarray(image_feats, jnp.float32)
    h1 = jnp.asarray(h1, jnp.float32)
    w_img = jnp.asarray(w_img, jnp.float32)
    w_lstm = jnp.asarray(w_lstm, jnp.float32)

    B, N, D_img = image_feats.shape
    B2, T, D_lstm = h1.shape
    H, D_img2 = w_img.shape
    assert B == B2 and D_img2 == D_img and w_lstm.shape == (H, D_lstm)

    cdt = jnp.bfloat16 if use_bf16 else jnp.float32
    bpe = 2 if use_bf16 else 4

    # Only pre-fuse the weights when it does not grow flops / residency
    # (fused inner dim is D_lstm, unfused inner dim is H).
    fuse = D_lstm <= H

    # Pad the region axis to a multiple of 8 so in-kernel reshapes stay on
    # (8, 128) tile boundaries; padded regions are masked before the softmax.
    N_pad = _round_up(N, 8)
    img_c = image_feats.astype(cdt)
    if N_pad != N:
        img_c = jnp.pad(img_c, ((0, 0), (0, N_pad - N), (0, 0)))
    h1_c = h1.astype(cdt)

    if fuse:
        m_fused = jnp.dot(w_img.T, w_lstm).astype(cdt)          # (D_img, D_lstm)
        weight_args = (m_fused,)
        weight_specs = [pl.BlockSpec((D_img, D_lstm), lambda b: (0, 0))]
        kernel = _va_kernel_fused
    else:
        # Pre-transpose the (small) weights so the kernel runs plain (M,K)x(K,N).
        weight_args = (w_img.T.astype(cdt), w_lstm.T.astype(cdt))
        weight_specs = [pl.BlockSpec((D_img, H), lambda b: (0, 0)),
                        pl.BlockSpec((D_lstm, H), lambda b: (0, 0))]
        kernel = _va_kernel_unfused

    # ---- batch-tile selection from DMA granularity + per-chip VMEM budget ----
    try:
        vmem_cap = int(pltpu.get_tpu_info().vmem_capacity_bytes)
    except Exception:
        vmem_cap = 64 * 1024 * 1024     # conservative default (v7x per-TC VMEM)

    if tb is None:
        # ~4 MiB image_feats per step: amortizes the ~0.35 us/step pipeline cost
        # and keeps TB*N large enough to feed all four v5e MXUs.
        target_dma_bytes = 4 * 1024 * 1024
        tb = target_dma_bytes // max(1, N_pad * D_img * bpe)
        tb = _round_down8(tb)
        tb = min(tb, _round_up(B, 8))                 # never tile past the batch
        if B // 4 >= 8:                               # keep >=4 grid steps
            tb = min(tb, _round_down8(B // 4))        # (>=2 per v7x TensorCore)
        budget = int(vmem_cap * 0.6)
        while tb > 8 and _footprint_bytes(tb, N_pad, T, D_img, D_lstm, H,
                                          fuse, bpe) > budget:
            tb -= 8
        # Prefer a tb that divides B: avoids a full HBM pad copy of the inputs.
        if B % tb != 0:
            for cand in range(tb, max(8, tb // 2) - 1, -8):
                if B % cand == 0:
                    tb = cand
                    break
    tb = _round_down8(tb)

    footprint = _footprint_bytes(tb, N_pad, T, D_img, D_lstm, H, fuse, bpe)
    vmem_limit = max(32 * 1024 * 1024, footprint + 4 * 1024 * 1024)
    vmem_limit = min(vmem_limit, max(vmem_cap - 4 * 1024 * 1024, 32 * 1024 * 1024))

    # Ragged batch tail (only when no dividing tb exists, or B < 8).
    Bp = _round_up(B, tb)
    if Bp != B:
        img_c = jnp.pad(img_c, ((0, Bp - B), (0, 0), (0, 0)))
        h1_c = jnp.pad(h1_c, ((0, Bp - B), (0, 0), (0, 0)))

    grid = (Bp // tb,)

    out = pl.pallas_call(
        functools.partial(kernel, n_valid=N),
        out_shape=jax.ShapeDtypeStruct((Bp, D_img), jnp.float32),
        grid=grid,
        in_specs=[
            pl.BlockSpec((tb, N_pad, D_img), lambda b: (b, 0, 0)),  # image_feats
            pl.BlockSpec((tb, T, D_lstm), lambda b: (b, 0, 0)),     # h1
            *weight_specs,                                          # resident weights
        ],
        out_specs=pl.BlockSpec((tb, D_img), lambda b: (b, 0)),
        compiler_params=pltpu.CompilerParams(
            dimension_semantics=("parallel",),     # batch axis -> megacore/2-TC
            vmem_limit_bytes=int(vmem_limit),
        ),
    )(img_c, h1_c, *weight_args)

    return out[:B]                                                # (B, D_img)


# --------------------------------------------------------------------------- #
# Pure-JAX reference (faithful replica of the PyTorch forward)
# --------------------------------------------------------------------------- #
def _reference(image_feats, h1, w_img, w_lstm):
    emb_lstm = jnp.einsum("btd,hd->bth", h1, w_lstm)
    emb_img = jnp.einsum("bnd,hd->bnh", image_feats, w_img)
    sim = jnp.einsum("bnh,bth->bnt", emb_img, emb_lstm)
    s = jnp.max(sim, axis=-1, keepdims=True)          # topk(k=1, dim=-1).values
    att = jax.nn.softmax(s, axis=1)                   # softmax over regions N
    return jnp.sum(att * image_feats, axis=1)


if __name__ == "__main__":
    def run_case(name, B, N, T, D_img, D_lstm, H, seed):
        key = jax.random.fold_in(jax.random.PRNGKey(0), seed)
        k_img, k_h1, k_wi, k_wl = jax.random.split(key, 4)
        image_feats = jax.random.normal(k_img, (B, N, D_img), dtype=jnp.float32)
        h1 = jax.random.normal(k_h1, (B, T, D_lstm), dtype=jnp.float32)
        # PyTorch nn.Linear weight layout: (out_features, in_features).
        w_img = jax.random.normal(k_wi, (H, D_img), dtype=jnp.float32) * 0.1
        w_lstm = jax.random.normal(k_wl, (H, D_lstm), dtype=jnp.float32) * 0.1

        ref = _reference(image_feats, h1, w_img, w_lstm)

        # Exact-semantics check: f32 end-to-end vs. the PyTorch-equivalent ref.
        out_f32 = jax.block_until_ready(
            visual_attention(image_feats, h1, w_img, w_lstm, use_bf16=False))
        assert out_f32.shape == (B, D_img)
        assert jnp.allclose(out_f32, ref, atol=5e-4, rtol=5e-4), f"{name}: f32 mismatch"

        # Performance path: bf16-streamed matmuls, f32 accumulation / softmax.
        out_bf16 = jax.block_until_ready(
            visual_attention(image_feats, h1, w_img, w_lstm))
        assert out_bf16.shape == (B, D_img)
        rel = float(jnp.linalg.norm(out_bf16 - ref) / (jnp.linalg.norm(ref) + 1e-8))
        assert rel < 0.1, f"{name}: bf16 relative L2 error {rel:.3e}"

    # Fused-weight path (D_lstm <= H), 8-aligned region count.
    run_case("fused", B=2, N=16, T=8, D_img=32, D_lstm=32, H=32, seed=0)
    # Two-projection path (H < D_lstm) with a ragged region count (N padded+masked).
    run_case("unfused", B=4, N=20, T=8, D_img=64, D_lstm=48, H=16, seed=1)

    print("KERNEL_OK")
</pallas_src>

<mosaic_0001>
module attributes {stable_mosaic.version = 11 : i64} {
  func.func @_va_kernel_fused(%arg0: i32, %arg1: memref<8x16x32xf32, #tpu.memory_space<vmem>>, %arg2: memref<8x8x32xf32, #tpu.memory_space<vmem>>, %arg3: memref<32x32xf32, #tpu.memory_space<vmem>>, %arg4: memref<8x32xf32, #tpu.memory_space<vmem>>) attributes {dimension_semantics = [#tpu.dimension_semantics<parallel>], iteration_bounds = array<i64: 1>, scalar_prefetch = 0 : i64, scratch_operands = 0 : i64, tpu.core_type = #tpu.core_type<tc>, window_params = [{transform_indices = @transform_0, window_bounds = array<i64: 8, 16, 32>}, {transform_indices = @transform_1, window_bounds = array<i64: 8, 8, 32>}, {pipeline_mode = #tpu.pipeline_mode<synchronous>, transform_indices = @transform_2, window_bounds = array<i64: 32, 32>}, {transform_indices = @transform_3, window_bounds = array<i64: 8, 32>}]} {
    %c0 = arith.constant 0 : index
    %c0_0 = arith.constant 0 : index
    %c0_1 = arith.constant 0 : index
    %0 = vector.load %arg1[%c0, %c0_0, %c0_1] : memref<8x16x32xf32, #tpu.memory_space<vmem>>, vector<8x16x32xf32>
    %c0_2 = arith.constant 0 : index
    %c0_3 = arith.constant 0 : index
    %c0_4 = arith.constant 0 : index
    %1 = vector.load %arg2[%c0_2, %c0_3, %c0_4] : memref<8x8x32xf32, #tpu.memory_space<vmem>>, vector<8x8x32xf32>
    %2 = vector.shape_cast %0 : vector<8x16x32xf32> to vector<128x32xf32>
    %c0_5 = arith.constant 0 : index
    %c0_6 = arith.constant 0 : index
    %3 = vector.load %arg3[%c0_5, %c0_6] : memref<32x32xf32, #tpu.memory_space<vmem>>, vector<32x32xf32>
    %cst = arith.constant dense<0.000000e+00> : vector<128x32xf32>
    %4 = tpu.matmul %2, %3, %cst {dimension_numbers = #tpu.dot_dimension_numbers<[1], [0], [0], [1], [0, 0, 1, 1], [], []>} : vector<128x32xf32>, vector<32x32xf32>, vector<128x32xf32> -> vector<128x32xf32>
    %5 = vector.shape_cast %4 : vector<128x32xf32> to vector<8x16x32xf32>
    %cst_7 = arith.constant dense<0.000000e+00> : vector<8x16x8xf32>
    %6 = tpu.matmul %5, %1, %cst_7 {dimension_numbers = #tpu.dot_dimension_numbers<[2], [2], [1], [1], [0, 0, 0, 1, 1, 1], [0], [0]>} : vector<8x16x32xf32>, vector<8x8x32xf32>, vector<8x16x8xf32> -> vector<8x16x8xf32>
    %cst_8 = arith.constant dense<0xFF800000> : vector<8x16xf32>
    %7 = vector.multi_reduction <maximumf>, %6, %cst_8 [2] : vector<8x16x8xf32> to vector<8x16xf32>
    %cst_9 = arith.constant dense<0xFF800000> : vector<8xf32>
    %8 = vector.multi_reduction <maximumf>, %7, %cst_9 [1] : vector<8x16xf32> to vector<8xf32>
    %9 = vector.shape_cast %8 : vector<8xf32> to vector<8x1xf32>
    %10 = vector.broadcast %9 : vector<8x1xf32> to vector<8x16xf32>
    %11 = arith.subf %7, %10 : vector<8x16xf32>
    %12 = math.exp %11 : vector<8x16xf32>
    %cst_10 = arith.constant dense<0.000000e+00> : vector<8xf32>
    %13 = vector.multi_reduction <add>, %12, %cst_10 [1] : vector<8x16xf32> to vector<8xf32>
    %14 = vector.shape_cast %13 : vector<8xf32> to vector<8x1xf32>
    %15 = vector.broadcast %14 : vector<8x1xf32> to vector<8x16xf32>
    %16 = arith.divf %12, %15 : vector<8x16xf32>
    %17 = vector.shape_cast %16 : vector<8x16xf32> to vector<8x1x16xf32>
    %cst_11 = arith.constant dense<0.000000e+00> : vector<8x1x32xf32>
    %18 = tpu.matmul %17, %0, %cst_11 {dimension_numbers = #tpu.dot_dimension_numbers<[2], [1], [1], [2], [0, 0, 0, 1, 1, 2], [0], [0]>} : vector<8x1x16xf32>, vector<8x16x32xf32>, vector<8x1x32xf32> -> vector<8x1x32xf32>
    %19 = vector.shape_cast %18 : vector<8x1x32xf32> to vector<8x32xf32>
    %c0_12 = arith.constant 0 : index
    %c0_13 = arith.constant 0 : index
    %20 = vector.load %arg4[%c0_12, %c0_13] : memref<8x32xf32, #tpu.memory_space<vmem>>, vector<8x32xf32>
    tpu.vector_store %arg4[%c0_12, %c0_13], %19 {strides = array<i32>} : memref<8x32xf32, #tpu.memory_space<vmem>>, vector<8x32xf32>,
    return
  }
  func.func @transform_0(%arg0: i32) -> (i32, i32, i32) {
    %c0_i32 = arith.constant 0 : i32
    %c0_i32_0 = arith.constant 0 : i32
    %c0_i32_1 = arith.constant 0 : i32
    return %arg0, %c0_i32, %c0_i32_0 : i32, i32, i32
  }
  func.func @transform_1(%arg0: i32) -> (i32, i32, i32) {
    %c0_i32 = arith.constant 0 : i32
    %c0_i32_0 = arith.constant 0 : i32
    %c0_i32_1 = arith.constant 0 : i32
    return %arg0, %c0_i32, %c0_i32_0 : i32, i32, i32
  }
  func.func @transform_2(%arg0: i32) -> (i32, i32) {
    %c0_i32 = arith.constant 0 : i32
    %c0_i32_0 = arith.constant 0 : i32
    %c0_i32_1 = arith.constant 0 : i32
    return %c0_i32, %c0_i32_0 : i32, i32
  }
  func.func @transform_3(%arg0: i32) -> (i32, i32) {
    %c0_i32 = arith.constant 0 : i32
    %c0_i32_0 = arith.constant 0 : i32
    return %arg0, %c0_i32 : i32, i32
  }
}

</mosaic_0001>

<llo_original>
// kernel: tpu_custom_call.1
$region0: #{tpu_custom_call.1}
  #allocation0 [shape = 'u32[]', space=smem, size = 0x4, offset = 0x4, fixed_abs, tag = 'smem constant byte address 0x4 - core index']
  #allocation1 [shape = 'u32[144,128]{1,0:T(1,128)}', space=vmem, size = 0x12000, scoped, tag = 'internal scratch']
  %s0 = inlined_call_operand.hbm [shape: f32[8,16,32], index: 0, kind: input, shape index: {}]
  %s1 = inlined_call_operand.hbm [shape: f32[8,8,32], index: 1, kind: input, shape index: {}]
  %s2 = inlined_call_operand.hbm [shape: f32[32,32], index: 2, kind: input, shape index: {}]
  %s3 = inlined_call_operand.hbm [shape: f32[8,32], index: 3, kind: output, shape index: {}]
  %s4 = sld [smem:[#allocation0]]
  $region34: #{tpu_custom_call.1} parent=0
    _
  %s6 = ssub.s32 1, %s4
  %s7 = scalar_select 0, %s6, %s4
  $region1: #{tpu_custom_call.1} parent=0
    #allocation2 [shape = 'u8[65536]{0}', space=vmem, size = 0x10000, scoped, tag = 'input window, operand 0, single buffered']
    #allocation3 [shape = 's32[1]{0}', space=sflag, size = 0x4, scoped, tag = 'scoped memory for tpu_custom_call.1']
    #allocation4 [shape = 's32[1]{0}', space=sflag, size = 0x4, scoped, tag = 'scoped memory for tpu_custom_call.1']
    #allocation5 [shape = 'u8[32768]{0}', space=vmem, size = 0x8000, scoped, tag = 'input window, operand 1, single buffered']
    #allocation6 [shape = 's32[1]{0}', space=sflag, size = 0x4, scoped, tag = 'scoped memory for tpu_custom_call.1']
    #allocation7 [shape = 'u8[16384]{0}', space=vmem, size = 0x4000, scoped, tag = 'input window, operand 2, single buffered']
    #allocation8 [shape = 'u8[4096]{0}', space=vmem, size = 0x1000, scoped, tag = 'output window, operand 0, single buffered']
    %8 = vsyncpa [#allocation3], 0
    %9 = vsyncpa [#allocation6], 0
    %10 = vsyncpa [#allocation4], 0
    // Predicated region
    $region2: #{tpu_custom_call.1} parent=1 // pred_check
      _
    $region3: #{tpu_custom_call.1} parent=1 // pred_check_branch
      %12 = sbr.rel (0) target = $region5
    $region4: #{tpu_custom_call.1} parent=1 // pred_region
      %s14 = ssub.s32 2048, 2048
      %15 = vsyncadd [#allocation3], %s14
      %s16 = sshll.u32 [#allocation2], 4
      %s17 = int_to_ptr.vmem [resolvable:$true] %s16
      %22 = dma.hbm_to_vmem [thread:$0]  %s0, 2048, %s17, [#allocation3], 128, 128, 8
    $region5: #{tpu_custom_call.1} parent=1 // pred_fallthru
      _
    // Predicated region
    $region6: #{tpu_custom_call.1} parent=1 // pred_check
      _
    $region7: #{tpu_custom_call.1} parent=1 // pred_check_branch
      %24 = sbr.rel (0) target = $region9
    $region8: #{tpu_custom_call.1} parent=1 // pred_region
      %s26 = ssub.s32 1024, 1024
      %27 = vsyncadd [#allocation6], %s26
      %s28 = sshll.u32 [#allocation5], 4
      %s29 = int_to_ptr.vmem [resolvable:$true] %s28
      %34 = dma.hbm_to_vmem [thread:$0]  %s1, 1024, %s29, [#allocation6], 128, 128, 8
    $region9: #{tpu_custom_call.1} parent=1 // pred_fallthru
      _
    // Predicated region
    $region10: #{tpu_custom_call.1} parent=1 // pred_check
      _
    $region11: #{tpu_custom_call.1} parent=1 // pred_check_branch
      %36 = sbr.rel (0) target = $region13
    $region12: #{tpu_custom_call.1} parent=1 // pred_region
      %s38 = ssub.s32 512, 512
      %39 = vsyncadd [#allocation6], %s38
      %s40 = sshll.u32 [#allocation7], 4
      %s41 = int_to_ptr.vmem [resolvable:$true] %s40
      %46 = dma.hbm_to_vmem [thread:$0]  %s2, 512, %s41, [#allocation6], 128, 128, 8
    $region13: #{tpu_custom_call.1} parent=1 // pred_fallthru
      _
    // Predicated region
    $region14: #{tpu_custom_call.1} parent=1 // pred_check
      _
    $region15: #{tpu_custom_call.1} parent=1 // pred_check_branch
      %48 = sbr.rel (0) target = $region17
    $region16: #{tpu_custom_call.1} parent=1 // pred_region
      %49 = dma.done [#allocation3], 2048
    $region17: #{tpu_custom_call.1} parent=1 // pred_fallthru
      _
    // Predicated region
    $region18: #{tpu_custom_call.1} parent=1 // pred_check
      _
    $region19: #{tpu_custom_call.1} parent=1 // pred_check_branch
      %51 = sbr.rel (0) target = $region21
    $region20: #{tpu_custom_call.1} parent=1 // pred_region
      %52 = dma.done [#allocation6], 1024
    $region21: #{tpu_custom_call.1} parent=1 // pred_fallthru
      _
    // Predicated region
    $region22: #{tpu_custom_call.1} parent=1 // pred_check
      _
    $region23: #{tpu_custom_call.1} parent=1 // pred_check_branch
      %54 = sbr.rel (0) target = $region25
    $region24: #{tpu_custom_call.1} parent=1 // pred_region
      %55 = dma.done [#allocation6], 512
    $region25: #{tpu_custom_call.1} parent=1 // pred_fallthru
      _
    %v56 = vld [vmem:[#allocation2] sm:$0xff]
    %v57 = vld [vmem:[#allocation2 + $0x8] sm:$0xff]
    %v58 = vld [vmem:[#allocation2 + $0x10] sm:$0xff]
    %v59 = vld [vmem:[#allocation2 + $0x18] sm:$0xff]
    %v60 = vld [vmem:[#allocation2 + $0x20] sm:$0xff]
    %v61 = vld [vmem:[#allocation2 + $0x28] sm:$0xff]
    %v62 = vld [vmem:[#allocation2 + $0x30] sm:$0xff]
    %v63 = vld [vmem:[#allocation2 + $0x38] sm:$0xff]
    %v64 = vld [vmem:[#allocation2 + $0x40] sm:$0xff]
    %v65 = vld [vmem:[#allocation2 + $0x48] sm:$0xff]
    %v66 = vld [vmem:[#allocation2 + $0x50] sm:$0xff]
    %v67 = vld [vmem:[#allocation2 + $0x58] sm:$0xff]
    %v68 = vld [vmem:[#allocation2 + $0x60] sm:$0xff]
    %v69 = vld [vmem:[#allocation2 + $0x68] sm:$0xff]
    %v70 = vld [vmem:[#allocation2 + $0x70] sm:$0xff]
    %v71 = vld [vmem:[#allocation2 + $0x78] sm:$0xff]
    %v72 = vld [vmem:[#allocation5] sm:$0xff]
    %v73 = vld [vmem:[#allocation5 + $0x8] sm:$0xff]
    %v74 = vld [vmem:[#allocation5 + $0x10] sm:$0xff]
    %v75 = vld [vmem:[#allocation5 + $0x18] sm:$0xff]
    %v76 = vld [vmem:[#allocation5 + $0x20] sm:$0xff]
    %v77 = vld [vmem:[#allocation5 + $0x28] sm:$0xff]
    %v78 = vld [vmem:[#allocation5 + $0x30] sm:$0xff]
    %v79 = vld [vmem:[#allocation5 + $0x38] sm:$0xff]
    %v80 = vld [vmem:[#allocation7] sm:$0xff]
    %v81 = vld [vmem:[#allocation7 + $0x8] sm:$0xff]
    %v82 = vld [vmem:[#allocation7 + $0x10] sm:$0xff]
    %v83 = vld [vmem:[#allocation7 + $0x18] sm:$0xff]
    %vm84 = vcmask 261120
    %v86 = vsel %vm84, %v56, 0
    %v89 = vsel %vm84, %v57, 0
    %v92 = vsel %vm84, %v58, 0
    %v95 = vsel %vm84, %v59, 0
    %v98 = vsel %vm84, %v60, 0
    %v101 = vsel %vm84, %v61, 0
    %v104 = vsel %vm84, %v62, 0
    %v107 = vsel %vm84, %v63, 0
    %v110 = vsel %vm84, %v64, 0
    %v113 = vsel %vm84, %v65, 0
    %v116 = vsel %vm84, %v66, 0
    %v119 = vsel %vm84, %v67, 0
    %v122 = vsel %vm84, %v68, 0
    %v125 = vsel %vm84, %v69, 0
    %v128 = vsel %vm84, %v70, 0
    %v131 = vsel %vm84, %v71, 0
    %133 = vmatprep.subr.mxu0 0.0
    %134 = vmatpush1.msra.mxu0 %v80
    %135 = vmatprep.subr.mxu0 0.0
    %136 = vmatpush1.msra.mxu0 %v81
    %137 = vmatprep.subr.mxu0 0.0
    %138 = vmatpush1.msra.mxu0 %v82
    %139 = vmatprep.subr.mxu0 0.0
    %140 = vmatpush1.msra.mxu0 %v83
    %141 = vmatprep.subr.mxu0 0.0
    %142 = vmatpush1.msra.mxu0 0.0
    %143 = vmatprep.subr.mxu0 0.0
    %144 = vmatpush1.msra.mxu0 0.0
    %145 = vmatprep.subr.mxu0 0.0
    %146 = vmatpush1.msra.mxu0 0.0
    %147 = vmatprep.subr.mxu0 0.0
    %148 = vmatpush1.msra.mxu0 0.0
    %149 = vmatprep.subr.mxu0 0.0
    %150 = vmatpush1.msra.mxu0 0.0
    %151 = vmatprep.subr.mxu0 0.0
    %152 = vmatpush1.msra.mxu0 0.0
    %153 = vmatprep.subr.mxu0 0.0
    %154 = vmatpush1.msra.mxu0 0.0
    %155 = vmatprep.subr.mxu0 0.0
    %156 = vmatpush1.msra.mxu0 0.0
    %157 = vmatprep.subr.mxu0 0.0
    %158 = vmatpush1.msra.mxu0 0.0
    %159 = vmatprep.subr.mxu0 0.0
    %160 = vmatpush1.msra.mxu0 0.0
    %161 = vmatprep.subr.mxu0 0.0
    %162 = vmatpush1.msra.mxu0 0.0
    %163 = vmatprep.subr.mxu0 0.0
    %164 = vmatpush1.msra.mxu0 0.0
    %165 = vmatprep.subr.mxu0 0.0
    %166 = vmatpush1.msra.mxu0 0.0
    %167 = vmatprep.subr.mxu0 0.0
    %168 = vmatpush1.msra.mxu0 0.0
    %169 = vmatprep.subr.mxu0 0.0
    %170 = vmatpush1.msra.mxu0 0.0
    %171 = vmatprep.subr.mxu0 0.0
    %172 = vmatpush1.msra.mxu0 0.0
    %173 = vmatprep.subr.mxu0 0.0
    %174 = vmatpush1.msra.mxu0 0.0
    %175 = vmatprep.subr.mxu0 0.0
    %176 = vmatpush1.msra.mxu0 0.0
    %177 = vmatprep.subr.mxu0 0.0
    %178 = vmatpush1.msra.mxu0 0.0
    %179 = vmatprep.subr.mxu0 0.0
    %180 = vmatpush1.msra.mxu0 0.0
    %181 = vmatprep.subr.mxu0 0.0
    %182 = vmatpush1.msra.mxu0 0.0
    %183 = vmatprep.subr.mxu0 0.0
    %184 = vmatpush1.msra.mxu0 0.0
    %185 = vmatprep.subr.mxu0 0.0
    %186 = vmatpush1.msra.mxu0 0.0
    %187 = vmatprep.subr.mxu0 0.0
    %188 = vmatpush1.msra.mxu0 0.0
    %189 = vmatprep.subr.mxu0 0.0
    %190 = vmatpush1.msra.mxu0 0.0
    %191 = vmatprep.subr.mxu0 0.0
    %192 = vmatpush1.msra.mxu0 0.0
    %193 = vmatprep.subr.mxu0 0.0
    %194 = vmatpush1.msra.mxu0 0.0
    %195 = vmatprep.subr.mxu0 0.0
    %196 = vmatpush1.msra.mxu0 0.0
    %197 = vmatprep.mubr.f32.mxu0 0.0
    %198 = vmatmul.mubr.f32.gmra.mrb[0].mxu0 %v86
    %v199 = vpop.f32.mrb[0].mxu0
    %v200 = vadd.f32 0.0, %v199
    %v201 = vpop.f32.mrb[0].mxu0
    %202 = vmatprep.mubr.f32.mxu0 0.0
    %203 = vmatmul.mubr.f32.gmra.mrb[0].mxu0 %v89
    %v204 = vpop.f32.mrb[0].mxu0
    %v205 = vadd.f32 0.0, %v204
    %v206 = vpop.f32.mrb[0].mxu0
    %207 = vmatprep.mubr.f32.mxu0 0.0
    %208 = vmatmul.mubr.f32.gmra.mrb[0].mxu0 %v92
    %v209 = vpop.f32.mrb[0].mxu0
    %v210 = vadd.f32 0.0, %v209
    %v211 = vpop.f32.mrb[0].mxu0
    %212 = vmatprep.mubr.f32.mxu0 0.0
    %213 = vmatmul.mubr.f32.gmra.mrb[0].mxu0 %v95
    %v214 = vpop.f32.mrb[0].mxu0
    %v215 = vadd.f32 0.0, %v214
    %v216 = vpop.f32.mrb[0].mxu0
    %217 = vmatprep.mubr.f32.mxu0 0.0
    %218 = vmatmul.mubr.f32.gmra.mrb[0].mxu0 %v98
    %v219 = vpop.f32.mrb[0].mxu0
    %v220 = vadd.f32 0.0, %v219
    %v221 = vpop.f32.mrb[0].mxu0
    %222 = vmatprep.mubr.f32.mxu0 0.0
    %223 = vmatmul.mubr.f32.gmra.mrb[0].mxu0 %v101
    %v224 = vpop.f32.mrb[0].mxu0
    %v225 = vadd.f32 0.0, %v224
    %v226 = vpop.f32.mrb[0].mxu0
    %227 = vmatprep.mubr.f32.mxu0 0.0
    %228 = vmatmul.mubr.f32.gmra.mrb[0].mxu0 %v104
    %v229 = vpop.f32.mrb[0].mxu0
    %v230 = vadd.f32 0.0, %v229
    %v231 = vpop.f32.mrb[0].mxu0
    %232 = vmatprep.mubr.f32.mxu0 0.0
    %233 = vmatmul.mubr.f32.gmra.mrb[0].mxu0 %v107
    %v234 = vpop.f32.mrb[0].mxu0
    %v235 = vadd.f32 0.0, %v234
    %v236 = vpop.f32.mrb[0].mxu0
    %237 = vmatprep.mubr.f32.mxu0 0.0
    %238 = vmatmul.mubr.f32.gmra.mrb[0].mxu0 %v110
    %v239 = vpop.f32.mrb[0].mxu0
    %v240 = vadd.f32 0.0, %v239
    %v241 = vpop.f32.mrb[0].mxu0
    %242 = vmatprep.mubr.f32.mxu0 0.0
    %243 = vmatmul.mubr.f32.gmra.mrb[0].mxu0 %v113
    %v244 = vpop.f32.mrb[0].mxu0
    %v245 = vadd.f32 0.0, %v244
    %v246 = vpop.f32.mrb[0].mxu0
    %247 = vmatprep.mubr.f32.mxu0 0.0
    %248 = vmatmul.mubr.f32.gmra.mrb[0].mxu0 %v116
    %v249 = vpop.f32.mrb[0].mxu0
    %v250 = vadd.f32 0.0, %v249
    %v251 = vpop.f32.mrb[0].mxu0
    %252 = vmatprep.mubr.f32.mxu0 0.0
    %253 = vmatmul.mubr.f32.gmra.mrb[0].mxu0 %v119
    %v254 = vpop.f32.mrb[0].mxu0
    %v255 = vadd.f32 0.0, %v254
    %v256 = vpop.f32.mrb[0].mxu0
    %257 = vmatprep.mubr.f32.mxu0 0.0
    %258 = vmatmul.mubr.f32.gmra.mrb[0].mxu0 %v122
    %v259 = vpop.f32.mrb[0].mxu0
    %v260 = vadd.f32 0.0, %v259
    %v261 = vpop.f32.mrb[0].mxu0
    %262 = vmatprep.mubr.f32.mxu0 0.0
    %263 = vmatmul.mubr.f32.gmra.mrb[0].mxu0 %v125
    %v264 = vpop.f32.mrb[0].mxu0
    %v265 = vadd.f32 0.0, %v264
    %v266 = vpop.f32.mrb[0].mxu0
    %267 = vmatprep.mubr.f32.mxu0 0.0
    %268 = vmatmul.mubr.f32.gmra.mrb[0].mxu0 %v128
    %v269 = vpop.f32.mrb[0].mxu0
    %v270 = vadd.f32 0.0, %v269
    %v271 = vpop.f32.mrb[0].mxu0
    %272 = vmatprep.mubr.f32.mxu0 0.0
    %273 = vmatmul.mubr.f32.gmra.mrb[0].mxu0 %v131
    %v274 = vpop.f32.mrb[0].mxu0
    %v275 = vadd.f32 0.0, %v274
    %v276 = vpop.f32.mrb[0].mxu0
    %277 = vdwg.mxu0
    %v279 = vsel %vm84, %v200, 0
    %v282 = vsel %vm84, %v205, 0
    %v285 = vsel %vm84, %v72, 0
    %287 = vmatprep.subr.mxu0 0.0
    %288 = vmatpush1.xpose.msra.mxu0 %v285
    %289 = vmatprep.subr.mxu0 0.0
    %290 = vmatpush1.xpose.msra.mxu0 0.0
    %291 = vmatprep.subr.mxu0 0.0
    %292 = vmatpush1.xpose.msra.mxu0 0.0
    %293 = vmatprep.subr.mxu0 0.0
    %294 = vmatpush1.xpose.msra.mxu0 0.0
    %295 = vmatprep.subr.mxu0 0.0
    %296 = vmatpush1.xpose.msra.mxu0 0.0
    %297 = vmatprep.subr.mxu0 0.0
    %298 = vmatpush1.xpose.msra.mxu0 0.0
    %299 = vmatprep.subr.mxu0 0.0
    %300 = vmatpush1.xpose.msra.mxu0 0.0
    %301 = vmatprep.subr.mxu0 0.0
    %302 = vmatpush1.xpose.msra.mxu0 0.0
    %303 = vmatprep.subr.mxu0 0.0
    %304 = vmatpush1.xpose.msra.mxu0 0.0
    %305 = vmatprep.subr.mxu0 0.0
    %306 = vmatpush1.xpose.msra.mxu0 0.0
    %307 = vmatprep.subr.mxu0 0.0
    %308 = vmatpush1.xpose.msra.mxu0 0.0
    %309 = vmatprep.subr.mxu0 0.0
    %310 = vmatpush1.xpose.msra.mxu0 0.0
    %311 = vmatprep.subr.mxu0 0.0
    %312 = vmatpush1.xpose.msra.mxu0 0.0
    %313 = vmatprep.subr.mxu0 0.0
    %314 = vmatpush1.xpose.msra.mxu0 0.0
    %315 = vmatprep.subr.mxu0 0.0
    %316 = vmatpush1.xpose.msra.mxu0 0.0
    %317 = vmatprep.subr.mxu0 0.0
    %318 = vmatpush1.xpose.msra.mxu0 0.0
    %319 = vmatprep.subr.mxu0 0.0
    %320 = vmatpush1.xpose.msra.mxu0 0.0
    %321 = vmatprep.subr.mxu0 0.0
    %322 = vmatpush1.xpose.msra.mxu0 0.0
    %323 = vmatprep.subr.mxu0 0.0
    %324 = vmatpush1.xpose.msra.mxu0 0.0
    %325 = vmatprep.subr.mxu0 0.0
    %326 = vmatpush1.xpose.msra.mxu0 0.0
    %327 = vmatprep.subr.mxu0 0.0
    %328 = vmatpush1.xpose.msra.mxu0 0.0
    %329 = vmatprep.subr.mxu0 0.0
    %330 = vmatpush1.xpose.msra.mxu0 0.0
    %331 = vmatprep.subr.mxu0 0.0
    %332 = vmatpush1.xpose.msra.mxu0 0.0
    %333 = vmatprep.subr.mxu0 0.0
    %334 = vmatpush1.xpose.msra.mxu0 0.0
    %335 = vmatprep.subr.mxu0 0.0
    %336 = vmatpush1.xpose.msra.mxu0 0.0
    %337 = vmatprep.subr.mxu0 0.0
    %338 = vmatpush1.xpose.msra.mxu0 0.0
    %339 = vmatprep.subr.mxu0 0.0
    %340 = vmatpush1.xpose.msra.mxu0 0.0
    %341 = vmatprep.subr.mxu0 0.0
    %342 = vmatpush1.xpose.msra.mxu0 0.0
    %343 = vmatprep.subr.mxu0 0.0
    %344 = vmatpush1.xpose.msra.mxu0 0.0
    %345 = vmatprep.subr.mxu0 0.0
    %346 = vmatpush1.xpose.msra.mxu0 0.0
    %347 = vmatprep.subr.mxu0 0.0
    %348 = vmatpush1.xpose.msra.mxu0 0.0
    %349 = vmatprep.subr.mxu0 0.0
    %350 = vmatpush1.xpose.msra.mxu0 0.0
    %351 = vmatprep.mubr.f32.mxu0 0.0
    %352 = vmatmul.mubr.f32.gmra.mrb[0].mxu0 %v279
    %v353 = vpop.f32.mrb[0].mxu0
    %v354 = vadd.f32 0.0, %v353
    %v355 = vpop.f32.mrb[0].mxu0
    %356 = vmatprep.mubr.f32.mxu0 0.0
    %357 = vmatmul.mubr.f32.gmra.mrb[0].mxu0 %v282
    %v358 = vpop.f32.mrb[0].mxu0
    %v359 = vadd.f32 0.0, %v358
    %v360 = vpop.f32.mrb[0].mxu0
    %361 = vdwg.mxu0
    %v363 = vsel %vm84, %v210, 0
    %v366 = vsel %vm84, %v215, 0
    %v369 = vsel %vm84, %v73, 0
    %371 = vmatprep.subr.mxu0 0.0
    %372 = vmatpush1.xpose.msra.mxu0 %v369
    %373 = vmatprep.subr.mxu0 0.0
    %374 = vmatpush1.xpose.msra.mxu0 0.0
    %375 = vmatprep.subr.mxu0 0.0
    %376 = vmatpush1.xpose.msra.mxu0 0.0
    %377 = vmatprep.subr.mxu0 0.0
    %378 = vmatpush1.xpose.msra.mxu0 0.0
    %379 = vmatprep.subr.mxu0 0.0
    %380 = vmatpush1.xpose.msra.mxu0 0.0
    %381 = vmatprep.subr.mxu0 0.0
    %382 = vmatpush1.xpose.msra.mxu0 0.0
    %383 = vmatprep.subr.mxu0 0.0
    %384 = vmatpush1.xpose.msra.mxu0 0.0
    %385 = vmatprep.subr.mxu0 0.0
    %386 = vmatpush1.xpose.msra.mxu0 0.0
    %387 = vmatprep.subr.mxu0 0.0
    %388 = vmatpush1.xpose.msra.mxu0 0.0
    %389 = vmatprep.subr.mxu0 0.0
    %390 = vmatpush1.xpose.msra.mxu0 0.0
    %391 = vmatprep.subr.mxu0 0.0
    %392 = vmatpush1.xpose.msra.mxu0 0.0
    %393 = vmatprep.subr.mxu0 0.0
    %394 = vmatpush1.xpose.msra.mxu0 0.0
    %395 = vmatprep.subr.mxu0 0.0
    %396 = vmatpush1.xpose.msra.mxu0 0.0
    %397 = vmatprep.subr.mxu0 0.0
    %398 = vmatpush1.xpose.msra.mxu0 0.0
    %399 = vmatprep.subr.mxu0 0.0
    %400 = vmatpush1.xpose.msra.mxu0 0.0
    %401 = vmatprep.subr.mxu0 0.0
    %402 = vmatpush1.xpose.msra.mxu0 0.0
    %403 = vmatprep.subr.mxu0 0.0
    %404 = vmatpush1.xpose.msra.mxu0 0.0
    %405 = vmatprep.subr.mxu0 0.0
    %406 = vmatpush1.xpose.msra.mxu0 0.0
    %407 = vmatprep.subr.mxu0 0.0
    %408 = vmatpush1.xpose.msra.mxu0 0.0
    %409 = vmatprep.subr.mxu0 0.0
    %410 = vmatpush1.xpose.msra.mxu0 0.0
    %411 = vmatprep.subr.mxu0 0.0
    %412 = vmatpush1.xpose.msra.mxu0 0.0
    %413 = vmatprep.subr.mxu0 0.0
    %414 = vmatpush1.xpose.msra.mxu0 0.0
    %415 = vmatprep.subr.mxu0 0.0
    %416 = vmatpush1.xpose.msra.mxu0 0.0
    %417 = vmatprep.subr.mxu0 0.0
    %418 = vmatpush1.xpose.msra.mxu0 0.0
    %419 = vmatprep.subr.mxu0 0.0
    %420 = vmatpush1.xpose.msra.mxu0 0.0
    %421 = vmatprep.subr.mxu0 0.0
    %422 = vmatpush1.xpose.msra.mxu0 0.0
    %423 = vmatprep.subr.mxu0 0.0
    %424 = vmatpush1.xpose.msra.mxu0 0.0
    %425 = vmatprep.subr.mxu0 0.0
    %426 = vmatpush1.xpose.msra.mxu0 0.0
    %427 = vmatprep.subr.mxu0 0.0
    %428 = vmatpush1.xpose.msra.mxu0 0.0
    %429 = vmatprep.subr.mxu0 0.0
    %430 = vmatpush1.xpose.msra.mxu0 0.0
    %431 = vmatprep.subr.mxu0 0.0
    %432 = vmatpush1.xpose.msra.mxu0 0.0
    %433 = vmatprep.subr.mxu0 0.0
    %434 = vmatpush1.xpose.msra.mxu0 0.0
    %435 = vmatprep.mubr.f32.mxu0 0.0
    %436 = vmatmul.mubr.f32.gmra.mrb[0].mxu0 %v363
    %v437 = vpop.f32.mrb[0].mxu0
    %v438 = vadd.f32 0.0, %v437
    %v439 = vpop.f32.mrb[0].mxu0
    %440 = vmatprep.mubr.f32.mxu0 0.0
    %441 = vmatmul.mubr.f32.gmra.mrb[0].mxu0 %v366
    %v442 = vpop.f32.mrb[0].mxu0
    %v443 = vadd.f32 0.0, %v442
    %v444 = vpop.f32.mrb[0].mxu0
    %445 = vdwg.mxu0
    %v447 = vsel %vm84, %v220, 0
    %v450 = vsel %vm84, %v225, 0
    %v453 = vsel %vm84, %v74, 0
    %455 = vmatprep.subr.mxu0 0.0
    %456 = vmatpush1.xpose.msra.mxu0 %v453
    %457 = vmatprep.subr.mxu0 0.0
    %458 = vmatpush1.xpose.msra.mxu0 0.0
    %459 = vmatprep.subr.mxu0 0.0
    %460 = vmatpush1.xpose.msra.mxu0 0.0
    %461 = vmatprep.subr.mxu0 0.0
    %462 = vmatpush1.xpose.msra.mxu0 0.0
    %463 = vmatprep.subr.mxu0 0.0
    %464 = vmatpush1.xpose.msra.mxu0 0.0
    %465 = vmatprep.subr.mxu0 0.0
    %466 = vmatpush1.xpose.msra.mxu0 0.0
    %467 = vmatprep.subr.mxu0 0.0
    %468 = vmatpush1.xpose.msra.mxu0 0.0
    %469 = vmatprep.subr.mxu0 0.0
    %470 = vmatpush1.xpose.msra.mxu0 0.0
    %471 = vmatprep.subr.mxu0 0.0
    %472 = vmatpush1.xpose.msra.mxu0 0.0
    %473 = vmatprep.subr.mxu0 0.0
    %474 = vmatpush1.xpose.msra.mxu0 0.0
    %475 = vmatprep.subr.mxu0 0.0
    %476 = vmatpush1.xpose.msra.mxu0 0.0
    %477 = vmatprep.subr.mxu0 0.0
    %478 = vmatpush1.xpose.msra.mxu0 0.0
    %479 = vmatprep.subr.mxu0 0.0
    %480 = vmatpush1.xpose.msra.mxu0 0.0
    %481 = vmatprep.subr.mxu0 0.0
    %482 = vmatpush1.xpose.msra.mxu0 0.0
    %483 = vmatprep.subr.mxu0 0.0
    %484 = vmatpush1.xpose.msra.mxu0 0.0
    %485 = vmatprep.subr.mxu0 0.0
    %486 = vmatpush1.xpose.msra.mxu0 0.0
    %487 = vmatprep.subr.mxu0 0.0
    %488 = vmatpush1.xpose.msra.mxu0 0.0
    %489 = vmatprep.subr.mxu0 0.0
    %490 = vmatpush1.xpose.msra.mxu0 0.0
    %491 = vmatprep.subr.mxu0 0.0
    %492 = vmatpush1.xpose.msra.mxu0 0.0
    %493 = vmatprep.subr.mxu0 0.0
    %494 = vmatpush1.xpose.msra.mxu0 0.0
    %495 = vmatprep.subr.mxu0 0.0
    %496 = vmatpush1.xpose.msra.mxu0 0.0
    %497 = vmatprep.subr.mxu0 0.0
    %498 = vmatpush1.xpose.msra.mxu0 0.0
    %499 = vmatprep.subr.mxu0 0.0
    %500 = vmatpush1.xpose.msra.mxu0 0.0
    %501 = vmatprep.subr.mxu0 0.0
    %502 = vmatpush1.xpose.msra.mxu0 0.0
    %503 = vmatprep.subr.mxu0 0.0
    %504 = vmatpush1.xpose.msra.mxu0 0.0
    %505 = vmatprep.subr.mxu0 0.0
    %506 = vmatpush1.xpose.msra.mxu0 0.0
    %507 = vmatprep.subr.mxu0 0.0
    %508 = vmatpush1.xpose.msra.mxu0 0.0
    %509 = vmatprep.subr.mxu0 0.0
    %510 = vmatpush1.xpose.msra.mxu0 0.0
    %511 = vmatprep.subr.mxu0 0.0
    %512 = vmatpush1.xpose.msra.mxu0 0.0
    %513 = vmatprep.subr.mxu0 0.0
    %514 = vmatpush1.xpose.msra.mxu0 0.0
    %515 = vmatprep.subr.mxu0 0.0
    %516 = vmatpush1.xpose.msra.mxu0 0.0
    %517 = vmatprep.subr.mxu0 0.0
    %518 = vmatpush1.xpose.msra.mxu0 0.0
    %519 = vmatprep.mubr.f32.mxu0 0.0
    %520 = vmatmul.mubr.f32.gmra.mrb[0].mxu0 %v447
    %v521 = vpop.f32.mrb[0].mxu0
    %v522 = vadd.f32 0.0, %v521
    %v523 = vpop.f32.mrb[0].mxu0
    %524 = vmatprep.mubr.f32.mxu0 0.0
    %525 = vmatmul.mubr.f32.gmra.mrb[0].mxu0 %v450
    %v526 = vpop.f32.mrb[0].mxu0
    %v527 = vadd.f32 0.0, %v526
    %v528 = vpop.f32.mrb[0].mxu0
    %529 = vdwg.mxu0
    %v531 = vsel %vm84, %v230, 0
    %v534 = vsel %vm84, %v235, 0
    %v537 = vsel %vm84, %v75, 0
    %539 = vmatprep.subr.mxu0 0.0
    %540 = vmatpush1.xpose.msra.mxu0 %v537
    %541 = vmatprep.subr.mxu0 0.0
    %542 = vmatpush1.xpose.msra.mxu0 0.0
    %543 = vmatprep.subr.mxu0 0.0
    %544 = vmatpush1.xpose.msra.mxu0 0.0
    %545 = vmatprep.subr.mxu0 0.0
    %546 = vmatpush1.xpose.msra.mxu0 0.0
    %547 = vmatprep.subr.mxu0 0.0
    %548 = vmatpush1.xpose.msra.mxu0 0.0
    %549 = vmatprep.subr.mxu0 0.0
    %550 = vmatpush1.xpose.msra.mxu0 0.0
    %551 = vmatprep.subr.mxu0 0.0
    %552 = vmatpush1.xpose.msra.mxu0 0.0
    %553 = vmatprep.subr.mxu0 0.0
    %554 = vmatpush1.xpose.msra.mxu0 0.0
    %555 = vmatprep.subr.mxu0 0.0
    %556 = vmatpush1.xpose.msra.mxu0 0.0
    %557 = vmatprep.subr.mxu0 0.0
    %558 = vmatpush1.xpose.msra.mxu0 0.0
    %559 = vmatprep.subr.mxu0 0.0
    %560 = vmatpush1.xpose.msra.mxu0 0.0
    %561 = vmatprep.subr.mxu0 0.0
    %562 = vmatpush1.xpose.msra.mxu0 0.0
    %563 = vmatprep.subr.mxu0 0.0
    %564 = vmatpush1.xpose.msra.mxu0 0.0
    %565 = vmatprep.subr.mxu0 0.0
    %566 = vmatpush1.xpose.msra.mxu0 0.0
    %567 = vmatprep.subr.mxu0 0.0
    %568 = vmatpush1.xpose.msra.mxu0 0.0
    %569 = vmatprep.subr.mxu0 0.0
    %570 = vmatpush1.xpose.msra.mxu0 0.0
    %571 = vmatprep.subr.mxu0 0.0
    %572 = vmatpush1.xpose.msra.mxu0 0.0
    %573 = vmatprep.subr.mxu0 0.0
    %574 = vmatpush1.xpose.msra.mxu0 0.0
    %575 = vmatprep.subr.mxu0 0.0
    %576 = vmatpush1.xpose.msra.mxu0 0.0
    %577 = vmatprep.subr.mxu0 0.0
    %578 = vmatpush1.xpose.msra.mxu0 0.0
    %579 = vmatprep.subr.mxu0 0.0
    %580 = vmatpush1.xpose.msra.mxu0 0.0
    %581 = vmatprep.subr.mxu0 0.0
    %582 = vmatpush1.xpose.msra.mxu0 0.0
    %583 = vmatprep.subr.mxu0 0.0
    %584 = vmatpush1.xpose.msra.mxu0 0.0
    %585 = vmatprep.subr.mxu0 0.0
    %586 = vmatpush1.xpose.msra.mxu0 0.0
    %587 = vmatprep.subr.mxu0 0.0
    %588 = vmatpush1.xpose.msra.mxu0 0.0
    %589 = vmatprep.subr.mxu0 0.0
    %590 = vmatpush1.xpose.msra.mxu0 0.0
    %591 = vmatprep.subr.mxu0 0.0
    %592 = vmatpush1.xpose.msra.mxu0 0.0
    %593 = vmatprep.subr.mxu0 0.0
    %594 = vmatpush1.xpose.msra.mxu0 0.0
    %595 = vmatprep.subr.mxu0 0.0
    %596 = vmatpush1.xpose.msra.mxu0 0.0
    %597 = vmatprep.subr.mxu0 0.0
    %598 = vmatpush1.xpose.msra.mxu0 0.0
    %599 = vmatprep.subr.mxu0 0.0
    %600 = vmatpush1.xpose.msra.mxu0 0.0
    %601 = vmatprep.subr.mxu0 0.0
    %602 = vmatpush1.xpose.msra.mxu0 0.0
    %603 = vmatprep.mubr.f32.mxu0 0.0
    %604 = vmatmul.mubr.f32.gmra.mrb[0].mxu0 %v531
    %v605 = vpop.f32.mrb[0].mxu0
    %v606 = vadd.f32 0.0, %v605
    %v607 = vpop.f32.mrb[0].mxu0
    %608 = vmatprep.mubr.f32.mxu0 0.0
    %609 = vmatmul.mubr.f32.gmra.mrb[0].mxu0 %v534
    %v610 = vpop.f32.mrb[0].mxu0
    %v611 = vadd.f32 0.0, %v610
    %v612 = vpop.f32.mrb[0].mxu0
    %613 = vdwg.mxu0
    %v615 = vsel %vm84, %v240, 0
    %v618 = vsel %vm84, %v245, 0
    %v621 = vsel %vm84, %v76, 0
    %623 = vmatprep.subr.mxu0 0.0
    %624 = vmatpush1.xpose.msra.mxu0 %v621
    %625 = vmatprep.subr.mxu0 0.0
    %626 = vmatpush1.xpose.msra.mxu0 0.0
    %627 = vmatprep.subr.mxu0 0.0
    %628 = vmatpush1.xpose.msra.mxu0 0.0
    %629 = vmatprep.subr.mxu0 0.0
    %630 = vmatpush1.xpose.msra.mxu0 0.0
    %631 = vmatprep.subr.mxu0 0.0
    %632 = vmatpush1.xpose.msra.mxu0 0.0
    %633 = vmatprep.subr.mxu0 0.0
    %634 = vmatpush1.xpose.msra.mxu0 0.0
    %635 = vmatprep.subr.mxu0 0.0
    %636 = vmatpush1.xpose.msra.mxu0 0.0
    %637 = vmatprep.subr.mxu0 0.0
    %638 = vmatpush1.xpose.msra.mxu0 0.0
    %639 = vmatprep.subr.mxu0 0.0
    %640 = vmatpush1.xpose.msra.mxu0 0.0
    %641 = vmatprep.subr.mxu0 0.0
    %642 = vmatpush1.xpose.msra.mxu0 0.0
    %643 = vmatprep.subr.mxu0 0.0
    %644 = vmatpush1.xpose.msra.mxu0 0.0
    %645 = vmatprep.subr.mxu0 0.0
    %646 = vmatpush1.xpose.msra.mxu0 0.0
    %647 = vmatprep.subr.mxu0 0.0
    %648 = vmatpush1.xpose.msra.mxu0 0.0
    %649 = vmatprep.subr.mxu0 0.0
    %650 = vmatpush1.xpose.msra.mxu0 0.0
    %651 = vmatprep.subr.mxu0 0.0
    %652 = vmatpush1.xpose.msra.mxu0 0.0
    %653 = vmatprep.subr.mxu0 0.0
    %654 = vmatpush1.xpose.msra.mxu0 0.0
    %655 = vmatprep.subr.mxu0 0.0
    %656 = vmatpush1.xpose.msra.mxu0 0.0
    %657 = vmatprep.subr.mxu0 0.0
    %658 = vmatpush1.xpose.msra.mxu0 0.0
    %659 = vmatprep.subr.mxu0 0.0
    %660 = vmatpush1.xpose.msra.mxu0 0.0
    %661 = vmatprep.subr.mxu0 0.0
    %662 = vmatpush1.xpose.msra.mxu0 0.0
    %663 = vmatprep.subr.mxu0 0.0
    %664 = vmatpush1.xpose.msra.mxu0 0.0
    %665 = vmatprep.subr.mxu0 0.0
    %666 = vmatpush1.xpose.msra.mxu0 0.0
    %667 = vmatprep.subr.mxu0 0.0
    %668 = vmatpush1.xpose.msra.mxu0 0.0
    %669 = vmatprep.subr.mxu0 0.0
    %670 = vmatpush1.xpose.msra.mxu0 0.0
    %671 = vmatprep.subr.mxu0 0.0
    %672 = vmatpush1.xpose.msra.mxu0 0.0
    %673 = vmatprep.subr.mxu0 0.0
    %674 = vmatpush1.xpose.msra.mxu0 0.0
    %675 = vmatprep.subr.mxu0 0.0
    %676 = vmatpush1.xpose.msra.mxu0 0.0
    %677 = vmatprep.subr.mxu0 0.0
    %678 = vmatpush1.xpose.msra.mxu0 0.0
    %679 = vmatprep.subr.mxu0 0.0
    %680 = vmatpush1.xpose.msra.mxu0 0.0
    %681 = vmatprep.subr.mxu0 0.0
    %682 = vmatpush1.xpose.msra.mxu0 0.0
    %683 = vmatprep.subr.mxu0 0.0
    %684 = vmatpush1.xpose.msra.mxu0 0.0
    %685 = vmatprep.subr.mxu0 0.0
    %686 = vmatpush1.xpose.msra.mxu0 0.0
    %687 = vmatprep.mubr.f32.mxu0 0.0
    %688 = vmatmul.mubr.f32.gmra.mrb[0].mxu0 %v615
    %v689 = vpop.f32.mrb[0].mxu0
    %v690 = vadd.f32 0.0, %v689
    %v691 = vpop.f32.mrb[0].mxu0
    %692 = vmatprep.mubr.f32.mxu0 0.0
    %693 = vmatmul.mubr.f32.gmra.mrb[0].mxu0 %v618
    %v694 = vpop.f32.mrb[0].mxu0
    %v695 = vadd.f32 0.0, %v694
    %v696 = vpop.f32.mrb[0].mxu0
    %697 = vdwg.mxu0
    %v699 = vsel %vm84, %v250, 0
    %v702 = vsel %vm84, %v255, 0
    %v705 = vsel %vm84, %v77, 0
    %707 = vmatprep.subr.mxu0 0.0
    %708 = vmatpush1.xpose.msra.mxu0 %v705
    %709 = vmatprep.subr.mxu0 0.0
    %710 = vmatpush1.xpose.msra.mxu0 0.0
    %711 = vmatprep.subr.mxu0 0.0
    %712 = vmatpush1.xpose.msra.mxu0 0.0
    %713 = vmatprep.subr.mxu0 0.0
    %714 = vmatpush1.xpose.msra.mxu0 0.0
    %715 = vmatprep.subr.mxu0 0.0
    %716 = vmatpush1.xpose.msra.mxu0 0.0
    %717 = vmatprep.subr.mxu0 0.0
    %718 = vmatpush1.xpose.msra.mxu0 0.0
    %719 = vmatprep.subr.mxu0 0.0
    %720 = vmatpush1.xpose.msra.mxu0 0.0
    %721 = vmatprep.subr.mxu0 0.0
    %722 = vmatpush1.xpose.msra.mxu0 0.0
    %723 = vmatprep.subr.mxu0 0.0
    %724 = vmatpush1.xpose.msra.mxu0 0.0
    %725 = vmatprep.subr.mxu0 0.0
    %726 = vmatpush1.xpose.msra.mxu0 0.0
    %727 = vmatprep.subr.mxu0 0.0
    %728 = vmatpush1.xpose.msra.mxu0 0.0
    %729 = vmatprep.subr.mxu0 0.0
    %730 = vmatpush1.xpose.msra.mxu0 0.0
    %731 = vmatprep.subr.mxu0 0.0
    %732 = vmatpush1.xpose.msra.mxu0 0.0
    %733 = vmatprep.subr.mxu0 0.0
    %734 = vmatpush1.xpose.msra.mxu0 0.0
    %735 = vmatprep.subr.mxu0 0.0
    %736 = vmatpush1.xpose.msra.mxu0 0.0
    %737 = vmatprep.subr.mxu0 0.0
    %738 = vmatpush1.xpose.msra.mxu0 0.0
    %739 = vmatprep.subr.mxu0 0.0
    %740 = vmatpush1.xpose.msra.mxu0 0.0
    %741 = vmatprep.subr.mxu0 0.0
    %742 = vmatpush1.xpose.msra.mxu0 0.0
    %743 = vmatprep.subr.mxu0 0.0
    %744 = vmatpush1.xpose.msra.mxu0 0.0
    %745 = vmatprep.subr.mxu0 0.0
    %746 = vmatpush1.xpose.msra.mxu0 0.0
    %747 = vmatprep.subr.mxu0 0.0
    %748 = vmatpush1.xpose.msra.mxu0 0.0
    %749 = vmatprep.subr.mxu0 0.0
    %750 = vmatpush1.xpose.msra.mxu0 0.0
    %751 = vmatprep.subr.mxu0 0.0
    %752 = vmatpush1.xpose.msra.mxu0 0.0
    %753 = vmatprep.subr.mxu0 0.0
    %754 = vmatpush1.xpose.msra.mxu0 0.0
    %755 = vmatprep.subr.mxu0 0.0
    %756 = vmatpush1.xpose.msra.mxu0 0.0
    %757 = vmatprep.subr.mxu0 0.0
    %758 = vmatpush1.xpose.msra.mxu0 0.0
    %759 = vmatprep.subr.mxu0 0.0
    %760 = vmatpush1.xpose.msra.mxu0 0.0
    %761 = vmatprep.subr.mxu0 0.0
    %762 = vmatpush1.xpose.msra.mxu0 0.0
    %763 = vmatprep.subr.mxu0 0.0
    %764 = vmatpush1.xpose.msra.mxu0 0.0
    %765 = vmatprep.subr.mxu0 0.0
    %766 = vmatpush1.xpose.msra.mxu0 0.0
    %767 = vmatprep.subr.mxu0 0.0
    %768 = vmatpush1.xpose.msra.mxu0 0.0
    %769 = vmatprep.subr.mxu0 0.0
    %770 = vmatpush1.xpose.msra.mxu0 0.0
    %771 = vmatprep.mubr.f32.mxu0 0.0
    %772 = vmatmul.mubr.f32.gmra.mrb[0].mxu0 %v699
    %v773 = vpop.f32.mrb[0].mxu0
    %v774 = vadd.f32 0.0, %v773
    %v775 = vpop.f32.mrb[0].mxu0
    %776 = vmatprep.mubr.f32.mxu0 0.0
    %777 = vmatmul.mubr.f32.gmra.mrb[0].mxu0 %v702
    %v778 = vpop.f32.mrb[0].mxu0
    %v779 = vadd.f32 0.0, %v778
    %v780 = vpop.f32.mrb[0].mxu0
    %781 = vdwg.mxu0
    %v783 = vsel %vm84, %v260, 0
    %v786 = vsel %vm84, %v265, 0
    %v789 = vsel %vm84, %v78, 0
    %791 = vmatprep.subr.mxu0 0.0
    %792 = vmatpush1.xpose.msra.mxu0 %v789
    %793 = vmatprep.subr.mxu0 0.0
    %794 = vmatpush1.xpose.msra.mxu0 0.0
    %795 = vmatprep.subr.mxu0 0.0
    %796 = vmatpush1.xpose.msra.mxu0 0.0
    %797 = vmatprep.subr.mxu0 0.0
    %798 = vmatpush1.xpose.msra.mxu0 0.0
    %799 = vmatprep.subr.mxu0 0.0
    %800 = vmatpush1.xpose.msra.mxu0 0.0
    %801 = vmatprep.subr.mxu0 0.0
    %802 = vmatpush1.xpose.msra.mxu0 0.0
    %803 = vmatprep.subr.mxu0 0.0
    %804 = vmatpush1.xpose.msra.mxu0 0.0
    %805 = vmatprep.subr.mxu0 0.0
    %806 = vmatpush1.xpose.msra.mxu0 0.0
    %807 = vmatprep.subr.mxu0 0.0
    %808 = vmatpush1.xpose.msra.mxu0 0.0
    %809 = vmatprep.subr.mxu0 0.0
    %810 = vmatpush1.xpose.msra.mxu0 0.0
    %811 = vmatprep.subr.mxu0 0.0
    %812 = vmatpush1.xpose.msra.mxu0 0.0
    %813 = vmatprep.subr.mxu0 0.0
    %814 = vmatpush1.xpose.msra.mxu0 0.0
    %815 = vmatprep.subr.mxu0 0.0
    %816 = vmatpush1.xpose.msra.mxu0 0.0
    %817 = vmatprep.subr.mxu0 0.0
    %818 = vmatpush1.xpose.msra.mxu0 0.0
    %819 = vmatprep.subr.mxu0 0.0
    %820 = vmatpush1.xpose.msra.mxu0 0.0
    %821 = vmatprep.subr.mxu0 0.0
    %822 = vmatpush1.xpose.msra.mxu0 0.0
    %823 = vmatprep.subr.mxu0 0.0
    %824 = vmatpush1.xpose.msra.mxu0 0.0
    %825 = vmatprep.subr.mxu0 0.0
    %826 = vmatpush1.xpose.msra.mxu0 0.0
    %827 = vmatprep.subr.mxu0 0.0
    %828 = vmatpush1.xpose.msra.mxu0 0.0
    %829 = vmatprep.subr.mxu0 0.0
    %830 = vmatpush1.xpose.msra.mxu0 0.0
    %831 = vmatprep.subr.mxu0 0.0
    %832 = vmatpush1.xpose.msra.mxu0 0.0
    %833 = vmatprep.subr.mxu0 0.0
    %834 = vmatpush1.xpose.msra.mxu0 0.0
    %835 = vmatprep.subr.mxu0 0.0
    %836 = vmatpush1.xpose.msra.mxu0 0.0
    %837 = vmatprep.subr.mxu0 0.0
    %838 = vmatpush1.xpose.msra.mxu0 0.0
    %839 = vmatprep.subr.mxu0 0.0
    %840 = vmatpush1.xpose.msra.mxu0 0.0
    %841 = vmatprep.subr.mxu0 0.0
    %842 = vmatpush1.xpose.msra.mxu0 0.0
    %843 = vmatprep.subr.mxu0 0.0
    %844 = vmatpush1.xpose.msra.mxu0 0.0
    %845 = vmatprep.subr.mxu0 0.0
    %846 = vmatpush1.xpose.msra.mxu0 0.0
    %847 = vmatprep.subr.mxu0 0.0
    %848 = vmatpush1.xpose.msra.mxu0 0.0
    %849 = vmatprep.subr.mxu0 0.0
    %850 = vmatpush1.xpose.msra.mxu0 0.0
    %851 = vmatprep.subr.mxu0 0.0
    %852 = vmatpush1.xpose.msra.mxu0 0.0
    %853 = vmatprep.subr.mxu0 0.0
    %854 = vmatpush1.xpose.msra.mxu0 0.0
    %855 = vmatprep.mubr.f32.mxu0 0.0
    %856 = vmatmul.mubr.f32.gmra.mrb[0].mxu0 %v783
    %v857 = vpop.f32.mrb[0].mxu0
    %v858 = vadd.f32 0.0, %v857
    %v859 = vpop.f32.mrb[0].mxu0
    %860 = vmatprep.mubr.f32.mxu0 0.0
    %861 = vmatmul.mubr.f32.gmra.mrb[0].mxu0 %v786
    %v862 = vpop.f32.mrb[0].mxu0
    %v863 = vadd.f32 0.0, %v862
    %v864 = vpop.f32.mrb[0].mxu0
    %865 = vdwg.mxu0
    %v867 = vsel %vm84, %v270, 0
    %v870 = vsel %vm84, %v275, 0
    %v873 = vsel %vm84, %v79, 0
    %875 = vmatprep.subr.mxu0 0.0
    %876 = vmatpush1.xpose.msra.mxu0 %v873
    %877 = vmatprep.subr.mxu0 0.0
    %878 = vmatpush1.xpose.msra.mxu0 0.0
    %879 = vmatprep.subr.mxu0 0.0
    %880 = vmatpush1.xpose.msra.mxu0 0.0
    %881 = vmatprep.subr.mxu0 0.0
    %882 = vmatpush1.xpose.msra.mxu0 0.0
    %883 = vmatprep.subr.mxu0 0.0
    %884 = vmatpush1.xpose.msra.mxu0 0.0
    %885 = vmatprep.subr.mxu0 0.0
    %886 = vmatpush1.xpose.msra.mxu0 0.0
    %887 = vmatprep.subr.mxu0 0.0
    %888 = vmatpush1.xpose.msra.mxu0 0.0
    %889 = vmatprep.subr.mxu0 0.0
    %890 = vmatpush1.xpose.msra.mxu0 0.0
    %891 = vmatprep.subr.mxu0 0.0
    %892 = vmatpush1.xpose.msra.mxu0 0.0
    %893 = vmatprep.subr.mxu0 0.0
    %894 = vmatpush1.xpose.msra.mxu0 0.0
    %895 = vmatprep.subr.mxu0 0.0
    %896 = vmatpush1.xpose.msra.mxu0 0.0
    %897 = vmatprep.subr.mxu0 0.0
    %898 = vmatpush1.xpose.msra.mxu0 0.0
    %899 = vmatprep.subr.mxu0 0.0
    %900 = vmatpush1.xpose.msra.mxu0 0.0
    %901 = vmatprep.subr.mxu0 0.0
    %902 = vmatpush1.xpose.msra.mxu0 0.0
    %903 = vmatprep.subr.mxu0 0.0
    %904 = vmatpush1.xpose.msra.mxu0 0.0
    %905 = vmatprep.subr.mxu0 0.0
    %906 = vmatpush1.xpose.msra.mxu0 0.0
    %907 = vmatprep.subr.mxu0 0.0
    %908 = vmatpush1.xpose.msra.mxu0 0.0
    %909 = vmatprep.subr.mxu0 0.0
    %910 = vmatpush1.xpose.msra.mxu0 0.0
    %911 = vmatprep.subr.mxu0 0.0
    %912 = vmatpush1.xpose.msra.mxu0 0.0
    %913 = vmatprep.subr.mxu0 0.0
    %914 = vmatpush1.xpose.msra.mxu0 0.0
    %915 = vmatprep.subr.mxu0 0.0
    %916 = vmatpush1.xpose.msra.mxu0 0.0
    %917 = vmatprep.subr.mxu0 0.0
    %918 = vmatpush1.xpose.msra.mxu0 0.0
    %919 = vmatprep.subr.mxu0 0.0
    %920 = vmatpush1.xpose.msra.mxu0 0.0
    %921 = vmatprep.subr.mxu0 0.0
    %922 = vmatpush1.xpose.msra.mxu0 0.0
    %923 = vmatprep.subr.mxu0 0.0
    %924 = vmatpush1.xpose.msra.mxu0 0.0
    %925 = vmatprep.subr.mxu0 0.0
    %926 = vmatpush1.xpose.msra.mxu0 0.0
    %927 = vmatprep.subr.mxu0 0.0
    %928 = vmatpush1.xpose.msra.mxu0 0.0
    %929 = vmatprep.subr.mxu0 0.0
    %930 = vmatpush1.xpose.msra.mxu0 0.0
    %931 = vmatprep.subr.mxu0 0.0
    %932 = vmatpush1.xpose.msra.mxu0 0.0
    %933 = vmatprep.subr.mxu0 0.0
    %934 = vmatpush1.xpose.msra.mxu0 0.0
    %935 = vmatprep.subr.mxu0 0.0
    %936 = vmatpush1.xpose.msra.mxu0 0.0
    %937 = vmatprep.subr.mxu0 0.0
    %938 = vmatpush1.xpose.msra.mxu0 0.0
    %939 = vmatprep.mubr.f32.mxu0 0.0
    %940 = vmatmul.mubr.f32.gmra.mrb[0].mxu0 %v867
    %v941 = vpop.f32.mrb[0].mxu0
    %v942 = vadd.f32 0.0, %v941
    %v943 = vpop.f32.mrb[0].mxu0
    %944 = vmatprep.mubr.f32.mxu0 0.0
    %945 = vmatmul.mubr.f32.gmra.mrb[0].mxu0 %v870
    %v946 = vpop.f32.mrb[0].mxu0
    %v947 = vadd.f32 0.0, %v946
    %v948 = vpop.f32.mrb[0].mxu0
    %949 = vdwg.mxu0
    %vm950 = vcmask 64512
    %v951 = vsel %vm950, %v354, -inf
    %952 = vmax.xlane.f32.xlu0 %v951
    %v953 = vpop.xlane.xlu0 %952
    %v954 = vsel %vm950, %v359, -inf
    %955 = vmax.xlane.f32.xlu0 %v954
    %v956 = vpop.xlane.xlu0 %955
    %v957 = vsel %vm950, %v438, -inf
    %958 = vmax.xlane.f32.xlu0 %v957
    %v959 = vpop.xlane.xlu0 %958
    %v960 = vsel %vm950, %v443, -inf
    %961 = vmax.xlane.f32.xlu0 %v960
    %v962 = vpop.xlane.xlu0 %961
    %v963 = vsel %vm950, %v522, -inf
    %964 = vmax.xlane.f32.xlu0 %v963
    %v965 = vpop.xlane.xlu0 %964
    %v966 = vsel %vm950, %v527, -inf
    %967 = vmax.xlane.f32.xlu0 %v966
    %v968 = vpop.xlane.xlu0 %967
    %v969 = vsel %vm950, %v606, -inf
    %970 = vmax.xlane.f32.xlu0 %v969
    %v971 = vpop.xlane.xlu0 %970
    %v972 = vsel %vm950, %v611, -inf
    %973 = vmax.xlane.f32.xlu0 %v972
    %v974 = vpop.xlane.xlu0 %973
    %v975 = vsel %vm950, %v690, -inf
    %976 = vmax.xlane.f32.xlu0 %v975
    %v977 = vpop.xlane.xlu0 %976
    %v978 = vsel %vm950, %v695, -inf
    %979 = vmax.xlane.f32.xlu0 %v978
    %v980 = vpop.xlane.xlu0 %979
    %v981 = vsel %vm950, %v774, -inf
    %982 = vmax.xlane.f32.xlu0 %v981
    %v983 = vpop.xlane.xlu0 %982
    %v984 = vsel %vm950, %v779, -inf
    %985 = vmax.xlane.f32.xlu0 %v984
    %v986 = vpop.xlane.xlu0 %985
    %v987 = vsel %vm950, %v858, -inf
    %988 = vmax.xlane.f32.xlu0 %v987
    %v989 = vpop.xlane.xlu0 %988
    %v990 = vsel %vm950, %v863, -inf
    %991 = vmax.xlane.f32.xlu0 %v990
    %v992 = vpop.xlane.xlu0 %991
    %v993 = vsel %vm950, %v942, -inf
    %994 = vmax.xlane.f32.xlu0 %v993
    %v995 = vpop.xlane.xlu0 %994
    %v996 = vsel %vm950, %v947, -inf
    %997 = vmax.xlane.f32.xlu0 %v996
    %v998 = vpop.xlane.xlu0 %997
    %v1015 = vlaneseq
    %v1016 = vand.u32 %v1015, 127
    %v1017 = vlaneseq
    %v1018 = vshrl.u32 %v1017, 7
    %v1019 = vsub.s32 %v1016, %v1018
    %v1020 = vrot.slane %v953, %v1019
    %v1021 = vadd.s32 %v1016, 4294967288
    %v1022 = vlaneseq
    %v1023 = vshrl.u32 %v1022, 7
    %v1024 = vsub.s32 %v1021, %v1023
    %v1025 = vrot.slane %v956, %v1024
    %vm1026 = vcmask 130112
    %v1027 = vsel %vm1026, %v1025, %v1020
    %v1028 = vlaneseq
    %v1029 = vshrl.u32 %v1028, 7
    %v1030 = vsub.s32 %v1016, %v1029
    %v1031 = vrot.slane %v959, %v1030
    %v1032 = vlaneseq
    %v1033 = vshrl.u32 %v1032, 7
    %v1034 = vsub.s32 %v1021, %v1033
    %v1035 = vrot.slane %v962, %v1034
    %v1036 = vsel %vm1026, %v1035, %v1031
    %v1037 = vlaneseq
    %v1038 = vshrl.u32 %v1037, 7
    %v1039 = vsub.s32 %v1016, %v1038
    %v1040 = vrot.slane %v965, %v1039
    %v1041 = vlaneseq
    %v1042 = vshrl.u32 %v1041, 7
    %v1043 = vsub.s32 %v1021, %v1042
    %v1044 = vrot.slane %v968, %v1043
    %v1045 = vsel %vm1026, %v1044, %v1040
    %v1046 = vlaneseq
    %v1047 = vshrl.u32 %v1046, 7
    %v1048 = vsub.s32 %v1016, %v1047
    %v1049 = vrot.slane %v971, %v1048
    %v1050 = vlaneseq
    %v1051 = vshrl.u32 %v1050, 7
    %v1052 = vsub.s32 %v1021, %v1051
    %v1053 = vrot.slane %v974, %v1052
    %v1054 = vsel %vm1026, %v1053, %v1049
    %v1055 = vlaneseq
    %v1056 = vshrl.u32 %v1055, 7
    %v1057 = vsub.s32 %v1016, %v1056
    %v1058 = vrot.slane %v977, %v1057
    %v1059 = vlaneseq
    %v1060 = vshrl.u32 %v1059, 7
    %v1061 = vsub.s32 %v1021, %v1060
    %v1062 = vrot.slane %v980, %v1061
    %v1063 = vsel %vm1026, %v1062, %v1058
    %v1064 = vlaneseq
    %v1065 = vshrl.u32 %v1064, 7
    %v1066 = vsub.s32 %v1016, %v1065
    %v1067 = vrot.slane %v983, %v1066
    %v1068 = vlaneseq
    %v1069 = vshrl.u32 %v1068, 7
    %v1070 = vsub.s32 %v1021, %v1069
    %v1071 = vrot.slane %v986, %v1070
    %v1072 = vsel %vm1026, %v1071, %v1067
    %v1073 = vlaneseq
    %v1074 = vshrl.u32 %v1073, 7
    %v1075 = vsub.s32 %v1016, %v1074
    %v1076 = vrot.slane %v989, %v1075
    %v1077 = vlaneseq
    %v1078 = vshrl.u32 %v1077, 7
    %v1079 = vsub.s32 %v1021, %v1078
    %v1080 = vrot.slane %v992, %v1079
    %v1081 = vsel %vm1026, %v1080, %v1076
    %v1082 = vlaneseq
    %v1083 = vshrl.u32 %v1082, 7
    %v1084 = vsub.s32 %v1016, %v1083
    %v1085 = vrot.slane %v995, %v1084
    %v1086 = vlaneseq
    %v1087 = vshrl.u32 %v1086, 7
    %v1088 = vsub.s32 %v1021, %v1087
    %v1089 = vrot.slane %v998, %v1088
    %v1090 = vsel %vm1026, %v1089, %v1085
    %vm1091 = vcmask 1041409
    %v1092 = vsel %vm1091, %v1036, %v1027
    %vm1093 = vcmask 1042434
    %v1094 = vsel %vm1093, %v1045, %v1092
    %vm1095 = vcmask 1043459
    %v1096 = vsel %vm1095, %v1054, %v1094
    %vm1097 = vcmask 1044484
    %v1098 = vsel %vm1097, %v1063, %v1096
    %vm1099 = vcmask 1045509
    %v1100 = vsel %vm1099, %v1072, %v1098
    %vm1101 = vcmask 1046534
    %v1102 = vsel %vm1101, %v1081, %v1100
    %vm1103 = vcmask 1047559
    %v1104 = vsel %vm1103, %v1090, %v1102
    %vm1106 = vcmask 130048
    %v1107 = vsel %vm1106, %v1104, -inf
    %1108 = vmax.xlane.f32.xlu0 %v1107
    %v1109 = vpop.xlane.xlu0 %1108
    %v1111 = vlaneseq
    %v1112 = vshrl.u32 %v1111, 7
    %v1113 = vsub.s32 0, %v1112
    %v1114 = vrot.slane %v1109, %v1113
    %v1115 = vlaneseq
    %v1116 = vshrl.u32 %v1115, 7
    %v1117 = vsub.s32 1, %v1116
    %v1118 = vrot.slane %v1109, %v1117
    %v1119 = vlaneseq
    %v1120 = vshrl.u32 %v1119, 7
    %v1121 = vsub.s32 2, %v1120
    %v1122 = vrot.slane %v1109, %v1121
    %v1123 = vlaneseq
    %v1124 = vshrl.u32 %v1123, 7
    %v1125 = vsub.s32 3, %v1124
    %v1126 = vrot.slane %v1109, %v1125
    %v1127 = vlaneseq
    %v1128 = vshrl.u32 %v1127, 7
    %v1129 = vsub.s32 4, %v1128
    %v1130 = vrot.slane %v1109, %v1129
    %v1131 = vlaneseq
    %v1132 = vshrl.u32 %v1131, 7
    %v1133 = vsub.s32 5, %v1132
    %v1134 = vrot.slane %v1109, %v1133
    %v1135 = vlaneseq
    %v1136 = vshrl.u32 %v1135, 7
    %v1137 = vsub.s32 6, %v1136
    %v1138 = vrot.slane %v1109, %v1137
    %v1139 = vlaneseq
    %v1140 = vshrl.u32 %v1139, 7
    %v1141 = vsub.s32 7, %v1140
    %v1142 = vrot.slane %v1109, %v1141
    %v1151 = vsub.f32 %v953, %v1114
    %v1152 = vsub.f32 %v956, %v1114
    %v1153 = vsub.f32 %v959, %v1118
    %v1154 = vsub.f32 %v962, %v1118
    %v1155 = vsub.f32 %v965, %v1122
    %v1156 = vsub.f32 %v968, %v1122
    %v1157 = vsub.f32 %v971, %v1126
    %v1158 = vsub.f32 %v974, %v1126
    %v1159 = vsub.f32 %v977, %v1130
    %v1160 = vsub.f32 %v980, %v1130
    %v1161 = vsub.f32 %v983, %v1134
    %v1162 = vsub.f32 %v986, %v1134
    %v1163 = vsub.f32 %v989, %v1138
    %v1164 = vsub.f32 %v992, %v1138
    %v1165 = vsub.f32 %v995, %v1142
    %v1166 = vsub.f32 %v998, %v1142
    %v1167 = vmul.f32 %v1151, 1.442695
    %v1168 = vpow.pop %v1167
    %v1169 = vmul.f32 %v1152, 1.442695
    %v1170 = vpow.pop %v1169
    %v1171 = vmul.f32 %v1153, 1.442695
    %v1172 = vpow.pop %v1171
    %v1173 = vmul.f32 %v1154, 1.442695
    %v1174 = vpow.pop %v1173
    %v1175 = vmul.f32 %v1155, 1.442695
    %v1176 = vpow.pop %v1175
    %v1177 = vmul.f32 %v1156, 1.442695
    %v1178 = vpow.pop %v1177
    %v1179 = vmul.f32 %v1157, 1.442695
    %v1180 = vpow.pop %v1179
    %v1181 = vmul.f32 %v1158, 1.442695
    %v1182 = vpow.pop %v1181
    %v1183 = vmul.f32 %v1159, 1.442695
    %v1184 = vpow.pop %v1183
    %v1185 = vmul.f32 %v1160, 1.442695
    %v1186 = vpow.pop %v1185
    %v1187 = vmul.f32 %v1161, 1.442695
    %v1188 = vpow.pop %v1187
    %v1189 = vmul.f32 %v1162, 1.442695
    %v1190 = vpow.pop %v1189
    %v1191 = vmul.f32 %v1163, 1.442695
    %v1192 = vpow.pop %v1191
    %v1193 = vmul.f32 %v1164, 1.442695
    %v1194 = vpow.pop %v1193
    %v1195 = vmul.f32 %v1165, 1.442695
    %v1196 = vpow.pop %v1195
    %v1197 = vmul.f32 %v1166, 1.442695
    %v1198 = vpow.pop %v1197
    %1215 = vset.pattern.permute.xlu0 0
    %1216 = vperm.xlu0 %1215, %v1168
    %v1217 = vpop.permute.xlu0 %1216
    %1218 = vset.pattern.permute.xlu0 0
    %1219 = vperm.xlu0 %1218, %v1170
    %v1220 = vpop.permute.xlu0 %1219
    %1221 = vset.pattern.permute.xlu0 0
    %1222 = vperm.xlu0 %1221, %v1172
    %v1223 = vpop.permute.xlu0 %1222
    %1224 = vset.pattern.permute.xlu0 0
    %1225 = vperm.xlu0 %1224, %v1174
    %v1226 = vpop.permute.xlu0 %1225
    %1227 = vset.pattern.permute.xlu0 0
    %1228 = vperm.xlu0 %1227, %v1176
    %v1229 = vpop.permute.xlu0 %1228
    %1230 = vset.pattern.permute.xlu0 0
    %1231 = vperm.xlu0 %1230, %v1178
    %v1232 = vpop.permute.xlu0 %1231
    %1233 = vset.pattern.permute.xlu0 0
    %1234 = vperm.xlu0 %1233, %v1180
    %v1235 = vpop.permute.xlu0 %1234
    %1236 = vset.pattern.permute.xlu0 0
    %1237 = vperm.xlu0 %1236, %v1182
    %v1238 = vpop.permute.xlu0 %1237
    %1239 = vset.pattern.permute.xlu0 0
    %1240 = vperm.xlu0 %1239, %v1184
    %v1241 = vpop.permute.xlu0 %1240
    %1242 = vset.pattern.permute.xlu0 0
    %1243 = vperm.xlu0 %1242, %v1186
    %v1244 = vpop.permute.xlu0 %1243
    %1245 = vset.pattern.permute.xlu0 0
    %1246 = vperm.xlu0 %1245, %v1188
    %v1247 = vpop.permute.xlu0 %1246
    %1248 = vset.pattern.permute.xlu0 0
    %1249 = vperm.xlu0 %1248, %v1190
    %v1250 = vpop.permute.xlu0 %1249
    %1251 = vset.pattern.permute.xlu0 0
    %1252 = vperm.xlu0 %1251, %v1192
    %v1253 = vpop.permute.xlu0 %1252
    %1254 = vset.pattern.permute.xlu0 0
    %1255 = vperm.xlu0 %1254, %v1194
    %v1256 = vpop.permute.xlu0 %1255
    %1257 = vset.pattern.permute.xlu0 0
    %1258 = vperm.xlu0 %1257, %v1196
    %v1259 = vpop.permute.xlu0 %1258
    %1260 = vset.pattern.permute.xlu0 0
    %1261 = vperm.xlu0 %1260, %v1198
    %v1262 = vpop.permute.xlu0 %1261
    %v1263 = vlaneseq
    %v1264 = vshrl.u32 %v1263, 7
    %v1265 = vsub.s32 %v1016, %v1264
    %v1266 = vrot.slane %v1217, %v1265
    %v1267 = vlaneseq
    %v1268 = vshrl.u32 %v1267, 7
    %v1269 = vsub.s32 %v1021, %v1268
    %v1270 = vrot.slane %v1220, %v1269
    %v1271 = vsel %vm1026, %v1270, %v1266
    %v1272 = vlaneseq
    %v1273 = vshrl.u32 %v1272, 7
    %v1274 = vsub.s32 %v1016, %v1273
    %v1275 = vrot.slane %v1223, %v1274
    %v1276 = vlaneseq
    %v1277 = vshrl.u32 %v1276, 7
    %v1278 = vsub.s32 %v1021, %v1277
    %v1279 = vrot.slane %v1226, %v1278
    %v1280 = vsel %vm1026, %v1279, %v1275
    %v1281 = vlaneseq
    %v1282 = vshrl.u32 %v1281, 7
    %v1283 = vsub.s32 %v1016, %v1282
    %v1284 = vrot.slane %v1229, %v1283
    %v1285 = vlaneseq
    %v1286 = vshrl.u32 %v1285, 7
    %v1287 = vsub.s32 %v1021, %v1286
    %v1288 = vrot.slane %v1232, %v1287
    %v1289 = vsel %vm1026, %v1288, %v1284
    %v1290 = vlaneseq
    %v1291 = vshrl.u32 %v1290, 7
    %v1292 = vsub.s32 %v1016, %v1291
    %v1293 = vrot.slane %v1235, %v1292
    %v1294 = vlaneseq
    %v1295 = vshrl.u32 %v1294, 7
    %v1296 = vsub.s32 %v1021, %v1295
    %v1297 = vrot.slane %v1238, %v1296
    %v1298 = vsel %vm1026, %v1297, %v1293
    %v1299 = vlaneseq
    %v1300 = vshrl.u32 %v1299, 7
    %v1301 = vsub.s32 %v1016, %v1300
    %v1302 = vrot.slane %v1241, %v1301
    %v1303 = vlaneseq
    %v1304 = vshrl.u32 %v1303, 7
    %v1305 = vsub.s32 %v1021, %v1304
    %v1306 = vrot.slane %v1244, %v1305
    %v1307 = vsel %vm1026, %v1306, %v1302
    %v1308 = vlaneseq
    %v1309 = vshrl.u32 %v1308, 7
    %v1310 = vsub.s32 %v1016, %v1309
    %v1311 = vrot.slane %v1247, %v1310
    %v1312 = vlaneseq
    %v1313 = vshrl.u32 %v1312, 7
    %v1314 = vsub.s32 %v1021, %v1313
    %v1315 = vrot.slane %v1250, %v1314
    %v1316 = vsel %vm1026, %v1315, %v1311
    %v1317 = vlaneseq
    %v1318 = vshrl.u32 %v1317, 7
    %v1319 = vsub.s32 %v1016, %v1318
    %v1320 = vrot.slane %v1253, %v1319
    %v1321 = vlaneseq
    %v1322 = vshrl.u32 %v1321, 7
    %v1323 = vsub.s32 %v1021, %v1322
    %v1324 = vrot.slane %v1256, %v1323
    %v1325 = vsel %vm1026, %v1324, %v1320
    %v1326 = vlaneseq
    %v1327 = vshrl.u32 %v1326, 7
    %v1328 = vsub.s32 %v1016, %v1327
    %v1329 = vrot.slane %v1259, %v1328
    %v1330 = vlaneseq
    %v1331 = vshrl.u32 %v1330, 7
    %v1332 = vsub.s32 %v1021, %v1331
    %v1333 = vrot.slane %v1262, %v1332
    %v1334 = vsel %vm1026, %v1333, %v1329
    %v1335 = vsel %vm1091, %v1280, %v1271
    %v1336 = vsel %vm1093, %v1289, %v1335
    %v1337 = vsel %vm1095, %v1298, %v1336
    %v1338 = vsel %vm1097, %v1307, %v1337
    %v1339 = vsel %vm1099, %v1316, %v1338
    %v1340 = vsel %vm1101, %v1325, %v1339
    %v1341 = vsel %vm1103, %v1334, %v1340
    %v1343 = vsel %vm1106, %v1341, 0.0
    %1344 = vadd.xlane.f32.xlu0 %v1343
    %v1345 = vpop.xlane.xlu0 %1344
    %v1347 = vlaneseq
    %v1348 = vshrl.u32 %v1347, 7
    %v1349 = vsub.s32 0, %v1348
    %v1350 = vrot.slane %v1345, %v1349
    %v1351 = vlaneseq
    %v1352 = vshrl.u32 %v1351, 7
    %v1353 = vsub.s32 1, %v1352
    %v1354 = vrot.slane %v1345, %v1353
    %v1355 = vlaneseq
    %v1356 = vshrl.u32 %v1355, 7
    %v1357 = vsub.s32 2, %v1356
    %v1358 = vrot.slane %v1345, %v1357
    %v1359 = vlaneseq
    %v1360 = vshrl.u32 %v1359, 7
    %v1361 = vsub.s32 3, %v1360
    %v1362 = vrot.slane %v1345, %v1361
    %v1363 = vlaneseq
    %v1364 = vshrl.u32 %v1363, 7
    %v1365 = vsub.s32 4, %v1364
    %v1366 = vrot.slane %v1345, %v1365
    %v1367 = vlaneseq
    %v1368 = vshrl.u32 %v1367, 7
    %v1369 = vsub.s32 5, %v1368
    %v1370 = vrot.slane %v1345, %v1369
    %v1371 = vlaneseq
    %v1372 = vshrl.u32 %v1371, 7
    %v1373 = vsub.s32 6, %v1372
    %v1374 = vrot.slane %v1345, %v1373
    %v1375 = vlaneseq
    %v1376 = vshrl.u32 %v1375, 7
    %v1377 = vsub.s32 7, %v1376
    %v1378 = vrot.slane %v1345, %v1377
    %v1387 = vrcp.pop %v1350
    %v1388 = vmul.f32 %v1168, %v1387
    %v1389 = vmul.f32 %v1170, %v1387
    %v1390 = vrcp.pop %v1354
    %v1391 = vmul.f32 %v1172, %v1390
    %v1392 = vmul.f32 %v1174, %v1390
    %v1393 = vrcp.pop %v1358
    %v1394 = vmul.f32 %v1176, %v1393
    %v1395 = vmul.f32 %v1178, %v1393
    %v1396 = vrcp.pop %v1362
    %v1397 = vmul.f32 %v1180, %v1396
    %v1398 = vmul.f32 %v1182, %v1396
    %v1399 = vrcp.pop %v1366
    %v1400 = vmul.f32 %v1184, %v1399
    %v1401 = vmul.f32 %v1186, %v1399
    %v1402 = vrcp.pop %v1370
    %v1403 = vmul.f32 %v1188, %v1402
    %v1404 = vmul.f32 %v1190, %v1402
    %v1405 = vrcp.pop %v1374
    %v1406 = vmul.f32 %v1192, %v1405
    %v1407 = vmul.f32 %v1194, %v1405
    %v1408 = vrcp.pop %v1378
    %v1409 = vmul.f32 %v1196, %v1408
    %v1410 = vmul.f32 %v1198, %v1408
    %1413 = vset.pattern.permute.xlu0 0
    %1414 = vperm.xlu0 %1413, %v1388
    %v1415 = vpop.permute.xlu0 %1414
    %1416 = vset.pattern.permute.xlu0 0
    %1417 = vperm.xlu0 %1416, %v1389
    %v1418 = vpop.permute.xlu0 %1417
    %v1419 = vlaneseq
    %v1420 = vshrl.u32 %v1419, 7
    %v1421 = vsub.s32 %v1016, %v1420
    %v1422 = vrot.slane %v1415, %v1421
    %v1423 = vlaneseq
    %v1424 = vshrl.u32 %v1423, 7
    %v1425 = vsub.s32 %v1021, %v1424
    %v1426 = vrot.slane %v1418, %v1425
    %v1427 = vsel %vm1026, %v1426, %v1422
    %v1428 = vsel %vm1106, %v1427, 0
    %1430 = vmatprep.subr.mxu0 0.0
    %1431 = vmatpush1.msra.mxu0 %v56
    %1432 = vmatprep.subr.mxu0 0.0
    %1433 = vmatpush1.msra.mxu0 %v57
    %1434 = vmatprep.subr.mxu0 0.0
    %1435 = vmatpush1.msra.mxu0 0.0
    %1436 = vmatprep.subr.mxu0 0.0
    %1437 = vmatpush1.msra.mxu0 0.0
    %1438 = vmatprep.subr.mxu0 0.0
    %1439 = vmatpush1.msra.mxu0 0.0
    %1440 = vmatprep.subr.mxu0 0.0
    %1441 = vmatpush1.msra.mxu0 0.0
    %1442 = vmatprep.subr.mxu0 0.0
    %1443 = vmatpush1.msra.mxu0 0.0
    %1444 = vmatprep.subr.mxu0 0.0
    %1445 = vmatpush1.msra.mxu0 0.0
    %1446 = vmatprep.subr.mxu0 0.0
    %1447 = vmatpush1.msra.mxu0 0.0
    %1448 = vmatprep.subr.mxu0 0.0
    %1449 = vmatpush1.msra.mxu0 0.0
    %1450 = vmatprep.subr.mxu0 0.0
    %1451 = vmatpush1.msra.mxu0 0.0
    %1452 = vmatprep.subr.mxu0 0.0
    %1453 = vmatpush1.msra.mxu0 0.0
    %1454 = vmatprep.subr.mxu0 0.0
    %1455 = vmatpush1.msra.mxu0 0.0
    %1456 = vmatprep.subr.mxu0 0.0
    %1457 = vmatpush1.msra.mxu0 0.0
    %1458 = vmatprep.subr.mxu0 0.0
    %1459 = vmatpush1.msra.mxu0 0.0
    %1460 = vmatprep.subr.mxu0 0.0
    %1461 = vmatpush1.msra.mxu0 0.0
    %1462 = vmatprep.subr.mxu0 0.0
    %1463 = vmatpush1.msra.mxu0 0.0
    %1464 = vmatprep.subr.mxu0 0.0
    %1465 = vmatpush1.msra.mxu0 0.0
    %1466 = vmatprep.subr.mxu0 0.0
    %1467 = vmatpush1.msra.mxu0 0.0
    %1468 = vmatprep.subr.mxu0 0.0
    %1469 = vmatpush1.msra.mxu0 0.0
    %1470 = vmatprep.subr.mxu0 0.0
    %1471 = vmatpush1.msra.mxu0 0.0
    %1472 = vmatprep.subr.mxu0 0.0
    %1473 = vmatpush1.msra.mxu0 0.0
    %1474 = vmatprep.subr.mxu0 0.0
    %1475 = vmatpush1.msra.mxu0 0.0
    %1476 = vmatprep.subr.mxu0 0.0
    %1477 = vmatpush1.msra.mxu0 0.0
    %1478 = vmatprep.subr.mxu0 0.0
    %1479 = vmatpush1.msra.mxu0 0.0
    %1480 = vmatprep.subr.mxu0 0.0
    %1481 = vmatpush1.msra.mxu0 0.0
    %1482 = vmatprep.subr.mxu0 0.0
    %1483 = vmatpush1.msra.mxu0 0.0
    %1484 = vmatprep.subr.mxu0 0.0
    %1485 = vmatpush1.msra.mxu0 0.0
    %1486 = vmatprep.subr.mxu0 0.0
    %1487 = vmatpush1.msra.mxu0 0.0
    %1488 = vmatprep.subr.mxu0 0.0
    %1489 = vmatpush1.msra.mxu0 0.0
    %1490 = vmatprep.subr.mxu0 0.0
    %1491 = vmatpush1.msra.mxu0 0.0
    %1492 = vmatprep.subr.mxu0 0.0
    %1493 = vmatpush1.msra.mxu0 0.0
    %1494 = vmatprep.mubr.f32.mxu0 0.0
    %1495 = vmatmul.mubr.f32.gmra.mrb[0].mxu0 %v1428
    %v1496 = vpop.f32.mrb[0].mxu0
    %v1497 = vadd.f32 0.0, %v1496
    %v1498 = vpop.f32.mrb[0].mxu0
    %1499 = vdwg.mxu0
    %1502 = vset.pattern.permute.xlu0 0
    %1503 = vperm.xlu0 %1502, %v1391
    %v1504 = vpop.permute.xlu0 %1503
    %1505 = vset.pattern.permute.xlu0 0
    %1506 = vperm.xlu0 %1505, %v1392
    %v1507 = vpop.permute.xlu0 %1506
    %v1508 = vlaneseq
    %v1509 = vshrl.u32 %v1508, 7
    %v1510 = vsub.s32 %v1016, %v1509
    %v1511 = vrot.slane %v1504, %v1510
    %v1512 = vlaneseq
    %v1513 = vshrl.u32 %v1512, 7
    %v1514 = vsub.s32 %v1021, %v1513
    %v1515 = vrot.slane %v1507, %v1514
    %v1516 = vsel %vm1026, %v1515, %v1511
    %v1517 = vsel %vm1106, %v1516, 0
    %1519 = vmatprep.subr.mxu0 0.0
    %1520 = vmatpush1.msra.mxu0 %v58
    %1521 = vmatprep.subr.mxu0 0.0
    %1522 = vmatpush1.msra.mxu0 %v59
    %1523 = vmatprep.subr.mxu0 0.0
    %1524 = vmatpush1.msra.mxu0 0.0
    %1525 = vmatprep.subr.mxu0 0.0
    %1526 = vmatpush1.msra.mxu0 0.0
    %1527 = vmatprep.subr.mxu0 0.0
    %1528 = vmatpush1.msra.mxu0 0.0
    %1529 = vmatprep.subr.mxu0 0.0
    %1530 = vmatpush1.msra.mxu0 0.0
    %1531 = vmatprep.subr.mxu0 0.0
    %1532 = vmatpush1.msra.mxu0 0.0
    %1533 = vmatprep.subr.mxu0 0.0
    %1534 = vmatpush1.msra.mxu0 0.0
    %1535 = vmatprep.subr.mxu0 0.0
    %1536 = vmatpush1.msra.mxu0 0.0
    %1537 = vmatprep.subr.mxu0 0.0
    %1538 = vmatpush1.msra.mxu0 0.0
    %1539 = vmatprep.subr.mxu0 0.0
    %1540 = vmatpush1.msra.mxu0 0.0
    %1541 = vmatprep.subr.mxu0 0.0
    %1542 = vmatpush1.msra.mxu0 0.0
    %1543 = vmatprep.subr.mxu0 0.0
    %1544 = vmatpush1.msra.mxu0 0.0
    %1545 = vmatprep.subr.mxu0 0.0
    %1546 = vmatpush1.msra.mxu0 0.0
    %1547 = vmatprep.subr.mxu0 0.0
    %1548 = vmatpush1.msra.mxu0 0.0
    %1549 = vmatprep.subr.mxu0 0.0
    %1550 = vmatpush1.msra.mxu0 0.0
    %1551 = vmatprep.subr.mxu0 0.0
    %1552 = vmatpush1.msra.mxu0 0.0
    %1553 = vmatprep.subr.mxu0 0.0
    %1554 = vmatpush1.msra.mxu0 0.0
    %1555 = vmatprep.subr.mxu0 0.0
    %1556 = vmatpush1.msra.mxu0 0.0
    %1557 = vmatprep.subr.mxu0 0.0
    %1558 = vmatpush1.msra.mxu0 0.0
    %1559 = vmatprep.subr.mxu0 0.0
    %1560 = vmatpush1.msra.mxu0 0.0
    %1561 = vmatprep.subr.mxu0 0.0
    %1562 = vmatpush1.msra.mxu0 0.0
    %1563 = vmatprep.subr.mxu0 0.0
    %1564 = vmatpush1.msra.mxu0 0.0
    %1565 = vmatprep.subr.mxu0 0.0
    %1566 = vmatpush1.msra.mxu0 0.0
    %1567 = vmatprep.subr.mxu0 0.0
    %1568 = vmatpush1.msra.mxu0 0.0
    %1569 = vmatprep.subr.mxu0 0.0
    %1570 = vmatpush1.msra.mxu0 0.0
    %1571 = vmatprep.subr.mxu0 0.0
    %1572 = vmatpush1.msra.mxu0 0.0
    %1573 = vmatprep.subr.mxu0 0.0
    %1574 = vmatpush1.msra.mxu0 0.0
    %1575 = vmatprep.subr.mxu0 0.0
    %1576 = vmatpush1.msra.mxu0 0.0
    %1577 = vmatprep.subr.mxu0 0.0
    %1578 = vmatpush1.msra.mxu0 0.0
    %1579 = vmatprep.subr.mxu0 0.0
    %1580 = vmatpush1.msra.mxu0 0.0
    %1581 = vmatprep.subr.mxu0 0.0
    %1582 = vmatpush1.msra.mxu0 0.0
    %1583 = vmatprep.mubr.f32.mxu0 0.0
    %1584 = vmatmul.mubr.f32.gmra.mrb[0].mxu0 %v1517
    %v1585 = vpop.f32.mrb[0].mxu0
    %v1586 = vadd.f32 0.0, %v1585
    %v1587 = vpop.f32.mrb[0].mxu0
    %1588 = vdwg.mxu0
    %1591 = vset.pattern.permute.xlu0 0
    %1592 = vperm.xlu0 %1591, %v1394
    %v1593 = vpop.permute.xlu0 %1592
    %1594 = vset.pattern.permute.xlu0 0
    %1595 = vperm.xlu0 %1594, %v1395
    %v1596 = vpop.permute.xlu0 %1595
    %v1597 = vlaneseq
    %v1598 = vshrl.u32 %v1597, 7
    %v1599 = vsub.s32 %v1016, %v1598
    %v1600 = vrot.slane %v1593, %v1599
    %v1601 = vlaneseq
    %v1602 = vshrl.u32 %v1601, 7
    %v1603 = vsub.s32 %v1021, %v1602
    %v1604 = vrot.slane %v1596, %v1603
    %v1605 = vsel %vm1026, %v1604, %v1600
    %v1606 = vsel %vm1106, %v1605, 0
    %1608 = vmatprep.subr.mxu0 0.0
    %1609 = vmatpush1.msra.mxu0 %v60
    %1610 = vmatprep.subr.mxu0 0.0
    %1611 = vmatpush1.msra.mxu0 %v61
    %1612 = vmatprep.subr.mxu0 0.0
    %1613 = vmatpush1.msra.mxu0 0.0
    %1614 = vmatprep.subr.mxu0 0.0
    %1615 = vmatpush1.msra.mxu0 0.0
    %1616 = vmatprep.subr.mxu0 0.0
    %1617 = vmatpush1.msra.mxu0 0.0
    %1618 = vmatprep.subr.mxu0 0.0
    %1619 = vmatpush1.msra.mxu0 0.0
    %1620 = vmatprep.subr.mxu0 0.0
    %1621 = vmatpush1.msra.mxu0 0.0
    %1622 = vmatprep.subr.mxu0 0.0
    %1623 = vmatpush1.msra.mxu0 0.0
    %1624 = vmatprep.subr.mxu0 0.0
    %1625 = vmatpush1.msra.mxu0 0.0
    %1626 = vmatprep.subr.mxu0 0.0
    %1627 = vmatpush1.msra.mxu0 0.0
    %1628 = vmatprep.subr.mxu0 0.0
    %1629 = vmatpush1.msra.mxu0 0.0
    %1630 = vmatprep.subr.mxu0 0.0
    %1631 = vmatpush1.msra.mxu0 0.0
    %1632 = vmatprep.subr.mxu0 0.0
    %1633 = vmatpush1.msra.mxu0 0.0
    %1634 = vmatprep.subr.mxu0 0.0
    %1635 = vmatpush1.msra.mxu0 0.0
    %1636 = vmatprep.subr.mxu0 0.0
    %1637 = vmatpush1.msra.mxu0 0.0
    %1638 = vmatprep.subr.mxu0 0.0
    %1639 = vmatpush1.msra.mxu0 0.0
    %1640 = vmatprep.subr.mxu0 0.0
    %1641 = vmatpush1.msra.mxu0 0.0
    %1642 = vmatprep.subr.mxu0 0.0
    %1643 = vmatpush1.msra.mxu0 0.0
    %1644 = vmatprep.subr.mxu0 0.0
    %1645 = vmatpush1.msra.mxu0 0.0
    %1646 = vmatprep.subr.mxu0 0.0
    %1647 = vmatpush1.msra.mxu0 0.0
    %1648 = vmatprep.subr.mxu0 0.0
    %1649 = vmatpush1.msra.mxu0 0.0
    %1650 = vmatprep.subr.mxu0 0.0
    %1651 = vmatpush1.msra.mxu0 0.0
    %1652 = vmatprep.subr.mxu0 0.0
    %1653 = vmatpush1.msra.mxu0 0.0
    %1654 = vmatprep.subr.mxu0 0.0
    %1655 = vmatpush1.msra.mxu0 0.0
    %1656 = vmatprep.subr.mxu0 0.0
    %1657 = vmatpush1.msra.mxu0 0.0
    %1658 = vmatprep.subr.mxu0 0.0
    %1659 = vmatpush1.msra.mxu0 0.0
    %1660 = vmatprep.subr.mxu0 0.0
    %1661 = vmatpush1.msra.mxu0 0.0
    %1662 = vmatprep.subr.mxu0 0.0
    %1663 = vmatpush1.msra.mxu0 0.0
    %1664 = vmatprep.subr.mxu0 0.0
    %1665 = vmatpush1.msra.mxu0 0.0
    %1666 = vmatprep.subr.mxu0 0.0
    %1667 = vmatpush1.msra.mxu0 0.0
    %1668 = vmatprep.subr.mxu0 0.0
    %1669 = vmatpush1.msra.mxu0 0.0
    %1670 = vmatprep.subr.mxu0 0.0
    %1671 = vmatpush1.msra.mxu0 0.0
    %1672 = vmatprep.mubr.f32.mxu0 0.0
    %1673 = vmatmul.mubr.f32.gmra.mrb[0].mxu0 %v1606
    %v1674 = vpop.f32.mrb[0].mxu0
    %v1675 = vadd.f32 0.0, %v1674
    %v1676 = vpop.f32.mrb[0].mxu0
    %1677 = vdwg.mxu0
    %1680 = vset.pattern.permute.xlu0 0
    %1681 = vperm.xlu0 %1680, %v1397
    %v1682 = vpop.permute.xlu0 %1681
    %1683 = vset.pattern.permute.xlu0 0
    %1684 = vperm.xlu0 %1683, %v1398
    %v1685 = vpop.permute.xlu0 %1684
    %v1686 = vlaneseq
    %v1687 = vshrl.u32 %v1686, 7
    %v1688 = vsub.s32 %v1016, %v1687
    %v1689 = vrot.slane %v1682, %v1688
    %v1690 = vlaneseq
    %v1691 = vshrl.u32 %v1690, 7
    %v1692 = vsub.s32 %v1021, %v1691
    %v1693 = vrot.slane %v1685, %v1692
    %v1694 = vsel %vm1026, %v1693, %v1689
    %v1695 = vsel %vm1106, %v1694, 0
    %1697 = vmatprep.subr.mxu0 0.0
    %1698 = vmatpush1.msra.mxu0 %v62
    %1699 = vmatprep.subr.mxu0 0.0
    %1700 = vmatpush1.msra.mxu0 %v63
    %1701 = vmatprep.subr.mxu0 0.0
    %1702 = vmatpush1.msra.mxu0 0.0
    %1703 = vmatprep.subr.mxu0 0.0
    %1704 = vmatpush1.msra.mxu0 0.0
    %1705 = vmatprep.subr.mxu0 0.0
    %1706 = vmatpush1.msra.mxu0 0.0
    %1707 = vmatprep.subr.mxu0 0.0
    %1708 = vmatpush1.msra.mxu0 0.0
    %1709 = vmatprep.subr.mxu0 0.0
    %1710 = vmatpush1.msra.mxu0 0.0
    %1711 = vmatprep.subr.mxu0 0.0
    %1712 = vmatpush1.msra.mxu0 0.0
    %1713 = vmatprep.subr.mxu0 0.0
    %1714 = vmatpush1.msra.mxu0 0.0
    %1715 = vmatprep.subr.mxu0 0.0
    %1716 = vmatpush1.msra.mxu0 0.0
    %1717 = vmatprep.subr.mxu0 0.0
    %1718 = vmatpush1.msra.mxu0 0.0
    %1719 = vmatprep.subr.mxu0 0.0
    %1720 = vmatpush1.msra.mxu0 0.0
    %1721 = vmatprep.subr.mxu0 0.0
    %1722 = vmatpush1.msra.mxu0 0.0
    %1723 = vmatprep.subr.mxu0 0.0
    %1724 = vmatpush1.msra.mxu0 0.0
    %1725 = vmatprep.subr.mxu0 0.0
    %1726 = vmatpush1.msra.mxu0 0.0
    %1727 = vmatprep.subr.mxu0 0.0
    %1728 = vmatpush1.msra.mxu0 0.0
    %1729 = vmatprep.subr.mxu0 0.0
    %1730 = vmatpush1.msra.mxu0 0.0
    %1731 = vmatprep.subr.mxu0 0.0
    %1732 = vmatpush1.msra.mxu0 0.0
    %1733 = vmatprep.subr.mxu0 0.0
    %1734 = vmatpush1.msra.mxu0 0.0
    %1735 = vmatprep.subr.mxu0 0.0
    %1736 = vmatpush1.msra.mxu0 0.0
    %1737 = vmatprep.subr.mxu0 0.0
    %1738 = vmatpush1.msra.mxu0 0.0
    %1739 = vmatprep.subr.mxu0 0.0
    %1740 = vmatpush1.msra.mxu0 0.0
    %1741 = vmatprep.subr.mxu0 0.0
    %1742 = vmatpush1.msra.mxu0 0.0
    %1743 = vmatprep.subr.mxu0 0.0
    %1744 = vmatpush1.msra.mxu0 0.0
    %1745 = vmatprep.subr.mxu0 0.0
    %1746 = vmatpush1.msra.mxu0 0.0
    %1747 = vmatprep.subr.mxu0 0.0
    %1748 = vmatpush1.msra.mxu0 0.0
    %1749 = vmatprep.subr.mxu0 0.0
    %1750 = vmatpush1.msra.mxu0 0.0
    %1751 = vmatprep.subr.mxu0 0.0
    %1752 = vmatpush1.msra.mxu0 0.0
    %1753 = vmatprep.subr.mxu0 0.0
    %1754 = vmatpush1.msra.mxu0 0.0
    %1755 = vmatprep.subr.mxu0 0.0
    %1756 = vmatpush1.msra.mxu0 0.0
    %1757 = vmatprep.subr.mxu0 0.0
    %1758 = vmatpush1.msra.mxu0 0.0
    %1759 = vmatprep.subr.mxu0 0.0
    %1760 = vmatpush1.msra.mxu0 0.0
    %1761 = vmatprep.mubr.f32.mxu0 0.0
    %1762 = vmatmul.mubr.f32.gmra.mrb[0].mxu0 %v1695
    %v1763 = vpop.f32.mrb[0].mxu0
    %v1764 = vadd.f32 0.0, %v1763
    %v1765 = vpop.f32.mrb[0].mxu0
    %1766 = vdwg.mxu0
    %1769 = vset.pattern.permute.xlu0 0
    %1770 = vperm.xlu0 %1769, %v1400
    %v1771 = vpop.permute.xlu0 %1770
    %1772 = vset.pattern.permute.xlu0 0
    %1773 = vperm.xlu0 %1772, %v1401
    %v1774 = vpop.permute.xlu0 %1773
    %v1775 = vlaneseq
    %v1776 = vshrl.u32 %v1775, 7
    %v1777 = vsub.s32 %v1016, %v1776
    %v1778 = vrot.slane %v1771, %v1777
    %v1779 = vlaneseq
    %v1780 = vshrl.u32 %v1779, 7
    %v1781 = vsub.s32 %v1021, %v1780
    %v1782 = vrot.slane %v1774, %v1781
    %v1783 = vsel %vm1026, %v1782, %v1778
    %v1784 = vsel %vm1106, %v1783, 0
    %1786 = vmatprep.subr.mxu0 0.0
    %1787 = vmatpush1.msra.mxu0 %v64
    %1788 = vmatprep.subr.mxu0 0.0
    %1789 = vmatpush1.msra.mxu0 %v65
    %1790 = vmatprep.subr.mxu0 0.0
    %1791 = vmatpush1.msra.mxu0 0.0
    %1792 = vmatprep.subr.mxu0 0.0
    %1793 = vmatpush1.msra.mxu0 0.0
    %1794 = vmatprep.subr.mxu0 0.0
    %1795 = vmatpush1.msra.mxu0 0.0
    %1796 = vmatprep.subr.mxu0 0.0
    %1797 = vmatpush1.msra.mxu0 0.0
    %1798 = vmatprep.subr.mxu0 0.0
    %1799 = vmatpush1.msra.mxu0 0.0
    %1800 = vmatprep.subr.mxu0 0.0
    %1801 = vmatpush1.msra.mxu0 0.0
    %1802 = vmatprep.subr.mxu0 0.0
    %1803 = vmatpush1.msra.mxu0 0.0
    %1804 = vmatprep.subr.mxu0 0.0
    %1805 = vmatpush1.msra.mxu0 0.0
    %1806 = vmatprep.subr.mxu0 0.0
    %1807 = vmatpush1.msra.mxu0 0.0
    %1808 = vmatprep.subr.mxu0 0.0
    %1809 = vmatpush1.msra.mxu0 0.0
    %1810 = vmatprep.subr.mxu0 0.0
    %1811 = vmatpush1.msra.mxu0 0.0
    %1812 = vmatprep.subr.mxu0 0.0
    %1813 = vmatpush1.msra.mxu0 0.0
    %1814 = vmatprep.subr.mxu0 0.0
    %1815 = vmatpush1.msra.mxu0 0.0
    %1816 = vmatprep.subr.mxu0 0.0
    %1817 = vmatpush1.msra.mxu0 0.0
    %1818 = vmatprep.subr.mxu0 0.0
    %1819 = vmatpush1.msra.mxu0 0.0
    %1820 = vmatprep.subr.mxu0 0.0
    %1821 = vmatpush1.msra.mxu0 0.0
    %1822 = vmatprep.subr.mxu0 0.0
    %1823 = vmatpush1.msra.mxu0 0.0
    %1824 = vmatprep.subr.mxu0 0.0
    %1825 = vmatpush1.msra.mxu0 0.0
    %1826 = vmatprep.subr.mxu0 0.0
    %1827 = vmatpush1.msra.mxu0 0.0
    %1828 = vmatprep.subr.mxu0 0.0
    %1829 = vmatpush1.msra.mxu0 0.0
    %1830 = vmatprep.subr.mxu0 0.0
    %1831 = vmatpush1.msra.mxu0 0.0
    %1832 = vmatprep.subr.mxu0 0.0
    %1833 = vmatpush1.msra.mxu0 0.0
    %1834 = vmatprep.subr.mxu0 0.0
    %1835 = vmatpush1.msra.mxu0 0.0
    %1836 = vmatprep.subr.mxu0 0.0
    %1837 = vmatpush1.msra.mxu0 0.0
    %1838 = vmatprep.subr.mxu0 0.0
    %1839 = vmatpush1.msra.mxu0 0.0
    %1840 = vmatprep.subr.mxu0 0.0
    %1841 = vmatpush1.msra.mxu0 0.0
    %1842 = vmatprep.subr.mxu0 0.0
    %1843 = vmatpush1.msra.mxu0 0.0
    %1844 = vmatprep.subr.mxu0 0.0
    %1845 = vmatpush1.msra.mxu0 0.0
    %1846 = vmatprep.subr.mxu0 0.0
    %1847 = vmatpush1.msra.mxu0 0.0
    %1848 = vmatprep.subr.mxu0 0.0
    %1849 = vmatpush1.msra.mxu0 0.0
    %1850 = vmatprep.mubr.f32.mxu0 0.0
    %1851 = vmatmul.mubr.f32.gmra.mrb[0].mxu0 %v1784
    %v1852 = vpop.f32.mrb[0].mxu0
    %v1853 = vadd.f32 0.0, %v1852
    %v1854 = vpop.f32.mrb[0].mxu0
    %1855 = vdwg.mxu0
    %1858 = vset.pattern.permute.xlu0 0
    %1859 = vperm.xlu0 %1858, %v1403
    %v1860 = vpop.permute.xlu0 %1859
    %1861 = vset.pattern.permute.xlu0 0
    %1862 = vperm.xlu0 %1861, %v1404
    %v1863 = vpop.permute.xlu0 %1862
    %v1864 = vlaneseq
    %v1865 = vshrl.u32 %v1864, 7
    %v1866 = vsub.s32 %v1016, %v1865
    %v1867 = vrot.slane %v1860, %v1866
    %v1868 = vlaneseq
    %v1869 = vshrl.u32 %v1868, 7
    %v1870 = vsub.s32 %v1021, %v1869
    %v1871 = vrot.slane %v1863, %v1870
    %v1872 = vsel %vm1026, %v1871, %v1867
    %v1873 = vsel %vm1106, %v1872, 0
    %1875 = vmatprep.subr.mxu0 0.0
    %1876 = vmatpush1.msra.mxu0 %v66
    %1877 = vmatprep.subr.mxu0 0.0
    %1878 = vmatpush1.msra.mxu0 %v67
    %1879 = vmatprep.subr.mxu0 0.0
    %1880 = vmatpush1.msra.mxu0 0.0
    %1881 = vmatprep.subr.mxu0 0.0
    %1882 = vmatpush1.msra.mxu0 0.0
    %1883 = vmatprep.subr.mxu0 0.0
    %1884 = vmatpush1.msra.mxu0 0.0
    %1885 = vmatprep.subr.mxu0 0.0
    %1886 = vmatpush1.msra.mxu0 0.0
    %1887 = vmatprep.subr.mxu0 0.0
    %1888 = vmatpush1.msra.mxu0 0.0
    %1889 = vmatprep.subr.mxu0 0.0
    %1890 = vmatpush1.msra.mxu0 0.0
    %1891 = vmatprep.subr.mxu0 0.0
    %1892 = vmatpush1.msra.mxu0 0.0
    %1893 = vmatprep.subr.mxu0 0.0
    %1894 = vmatpush1.msra.mxu0 0.0
    %1895 = vmatprep.subr.mxu0 0.0
    %1896 = vmatpush1.msra.mxu0 0.0
    %1897 = vmatprep.subr.mxu0 0.0
    %1898 = vmatpush1.msra.mxu0 0.0
    %1899 = vmatprep.subr.mxu0 0.0
    %1900 = vmatpush1.msra.mxu0 0.0
    %1901 = vmatprep.subr.mxu0 0.0
    %1902 = vmatpush1.msra.mxu0 0.0
    %1903 = vmatprep.subr.mxu0 0.0
    %1904 = vmatpush1.msra.mxu0 0.0
    %1905 = vmatprep.subr.mxu0 0.0
    %1906 = vmatpush1.msra.mxu0 0.0
    %1907 = vmatprep.subr.mxu0 0.0
    %1908 = vmatpush1.msra.mxu0 0.0
    %1909 = vmatprep.subr.mxu0 0.0
    %1910 = vmatpush1.msra.mxu0 0.0
    %1911 = vmatprep.subr.mxu0 0.0
    %1912 = vmatpush1.msra.mxu0 0.0
    %1913 = vmatprep.subr.mxu0 0.0
    %1914 = vmatpush1.msra.mxu0 0.0
    %1915 = vmatprep.subr.mxu0 0.0
    %1916 = vmatpush1.msra.mxu0 0.0
    %1917 = vmatprep.subr.mxu0 0.0
    %1918 = vmatpush1.msra.mxu0 0.0
    %1919 = vmatprep.subr.mxu0 0.0
    %1920 = vmatpush1.msra.mxu0 0.0
    %1921 = vmatprep.subr.mxu0 0.0
    %1922 = vmatpush1.msra.mxu0 0.0
    %1923 = vmatprep.subr.mxu0 0.0
    %1924 = vmatpush1.msra.mxu0 0.0
    %1925 = vmatprep.subr.mxu0 0.0
    %1926 = vmatpush1.msra.mxu0 0.0
    %1927 = vmatprep.subr.mxu0 0.0
    %1928 = vmatpush1.msra.mxu0 0.0
    %1929 = vmatprep.subr.mxu0 0.0
    %1930 = vmatpush1.msra.mxu0 0.0
    %1931 = vmatprep.subr.mxu0 0.0
    %1932 = vmatpush1.msra.mxu0 0.0
    %1933 = vmatprep.subr.mxu0 0.0
    %1934 = vmatpush1.msra.mxu0 0.0
    %1935 = vmatprep.subr.mxu0 0.0
    %1936 = vmatpush1.msra.mxu0 0.0
    %1937 = vmatprep.subr.mxu0 0.0
    %1938 = vmatpush1.msra.mxu0 0.0
    %1939 = vmatprep.mubr.f32.mxu0 0.0
    %1940 = vmatmul.mubr.f32.gmra.mrb[0].mxu0 %v1873
    %v1941 = vpop.f32.mrb[0].mxu0
    %v1942 = vadd.f32 0.0, %v1941
    %v1943 = vpop.f32.mrb[0].mxu0
    %1944 = vdwg.mxu0
    %1947 = vset.pattern.permute.xlu0 0
    %1948 = vperm.xlu0 %1947, %v1406
    %v1949 = vpop.permute.xlu0 %1948
    %1950 = vset.pattern.permute.xlu0 0
    %1951 = vperm.xlu0 %1950, %v1407
    %v1952 = vpop.permute.xlu0 %1951
    %v1953 = vlaneseq
    %v1954 = vshrl.u32 %v1953, 7
    %v1955 = vsub.s32 %v1016, %v1954
    %v1956 = vrot.slane %v1949, %v1955
    %v1957 = vlaneseq
    %v1958 = vshrl.u32 %v1957, 7
    %v1959 = vsub.s32 %v1021, %v1958
    %v1960 = vrot.slane %v1952, %v1959
    %v1961 = vsel %vm1026, %v1960, %v1956
    %v1962 = vsel %vm1106, %v1961, 0
    %1964 = vmatprep.subr.mxu0 0.0
    %1965 = vmatpush1.msra.mxu0 %v68
    %1966 = vmatprep.subr.mxu0 0.0
    %1967 = vmatpush1.msra.mxu0 %v69
    %1968 = vmatprep.subr.mxu0 0.0
    %1969 = vmatpush1.msra.mxu0 0.0
    %1970 = vmatprep.subr.mxu0 0.0
    %1971 = vmatpush1.msra.mxu0 0.0
    %1972 = vmatprep.subr.mxu0 0.0
    %1973 = vmatpush1.msra.mxu0 0.0
    %1974 = vmatprep.subr.mxu0 0.0
    %1975 = vmatpush1.msra.mxu0 0.0
    %1976 = vmatprep.subr.mxu0 0.0
    %1977 = vmatpush1.msra.mxu0 0.0
    %1978 = vmatprep.subr.mxu0 0.0
    %1979 = vmatpush1.msra.mxu0 0.0
    %1980 = vmatprep.subr.mxu0 0.0
    %1981 = vmatpush1.msra.mxu0 0.0
    %1982 = vmatprep.subr.mxu0 0.0
    %1983 = vmatpush1.msra.mxu0 0.0
    %1984 = vmatprep.subr.mxu0 0.0
    %1985 = vmatpush1.msra.mxu0 0.0
    %1986 = vmatprep.subr.mxu0 0.0
    %1987 = vmatpush1.msra.mxu0 0.0
    %1988 = vmatprep.subr.mxu0 0.0
    %1989 = vmatpush1.msra.mxu0 0.0
    %1990 = vmatprep.subr.mxu0 0.0
    %1991 = vmatpush1.msra.mxu0 0.0
    %1992 = vmatprep.subr.mxu0 0.0
    %1993 = vmatpush1.msra.mxu0 0.0
    %1994 = vmatprep.subr.mxu0 0.0
    %1995 = vmatpush1.msra.mxu0 0.0
    %1996 = vmatprep.subr.mxu0 0.0
    %1997 = vmatpush1.msra.mxu0 0.0
    %1998 = vmatprep.subr.mxu0 0.0
    %1999 = vmatpush1.msra.mxu0 0.0
    %2000 = vmatprep.subr.mxu0 0.0
    %2001 = vmatpush1.msra.mxu0 0.0
    %2002 = vmatprep.subr.mxu0 0.0
    %2003 = vmatpush1.msra.mxu0 0.0
    %2004 = vmatprep.subr.mxu0 0.0
    %2005 = vmatpush1.msra.mxu0 0.0
    %2006 = vmatprep.subr.mxu0 0.0
    %2007 = vmatpush1.msra.mxu0 0.0
    %2008 = vmatprep.subr.mxu0 0.0
    %2009 = vmatpush1.msra.mxu0 0.0
    %2010 = vmatprep.subr.mxu0 0.0
    %2011 = vmatpush1.msra.mxu0 0.0
    %2012 = vmatprep.subr.mxu0 0.0
    %2013 = vmatpush1.msra.mxu0 0.0
    %2014 = vmatprep.subr.mxu0 0.0
    %2015 = vmatpush1.msra.mxu0 0.0
    %2016 = vmatprep.subr.mxu0 0.0
    %2017 = vmatpush1.msra.mxu0 0.0
    %2018 = vmatprep.subr.mxu0 0.0
    %2019 = vmatpush1.msra.mxu0 0.0
    %2020 = vmatprep.subr.mxu0 0.0
    %2021 = vmatpush1.msra.mxu0 0.0
    %2022 = vmatprep.subr.mxu0 0.0
    %2023 = vmatpush1.msra.mxu0 0.0
    %2024 = vmatprep.subr.mxu0 0.0
    %2025 = vmatpush1.msra.mxu0 0.0
    %2026 = vmatprep.subr.mxu0 0.0
    %2027 = vmatpush1.msra.mxu0 0.0
    %2028 = vmatprep.mubr.f32.mxu0 0.0
    %2029 = vmatmul.mubr.f32.gmra.mrb[0].mxu0 %v1962
    %v2030 = vpop.f32.mrb[0].mxu0
    %v2031 = vadd.f32 0.0, %v2030
    %v2032 = vpop.f32.mrb[0].mxu0
    %2033 = vdwg.mxu0
    %2036 = vset.pattern.permute.xlu0 0
    %2037 = vperm.xlu0 %2036, %v1409
    %v2038 = vpop.permute.xlu0 %2037
    %2039 = vset.pattern.permute.xlu0 0
    %2040 = vperm.xlu0 %2039, %v1410
    %v2041 = vpop.permute.xlu0 %2040
    %v2042 = vlaneseq
    %v2043 = vshrl.u32 %v2042, 7
    %v2044 = vsub.s32 %v1016, %v2043
    %v2045 = vrot.slane %v2038, %v2044
    %v2046 = vlaneseq
    %v2047 = vshrl.u32 %v2046, 7
    %v2048 = vsub.s32 %v1021, %v2047
    %v2049 = vrot.slane %v2041, %v2048
    %v2050 = vsel %vm1026, %v2049, %v2045
    %v2051 = vsel %vm1106, %v2050, 0
    %2053 = vmatprep.subr.mxu0 0.0
    %2054 = vmatpush1.msra.mxu0 %v70
    %2055 = vmatprep.subr.mxu0 0.0
    %2056 = vmatpush1.msra.mxu0 %v71
    %2057 = vmatprep.subr.mxu0 0.0
    %2058 = vmatpush1.msra.mxu0 0.0
    %2059 = vmatprep.subr.mxu0 0.0
    %2060 = vmatpush1.msra.mxu0 0.0
    %2061 = vmatprep.subr.mxu0 0.0
    %2062 = vmatpush1.msra.mxu0 0.0
    %2063 = vmatprep.subr.mxu0 0.0
    %2064 = vmatpush1.msra.mxu0 0.0
    %2065 = vmatprep.subr.mxu0 0.0
    %2066 = vmatpush1.msra.mxu0 0.0
    %2067 = vmatprep.subr.mxu0 0.0
    %2068 = vmatpush1.msra.mxu0 0.0
    %2069 = vmatprep.subr.mxu0 0.0
    %2070 = vmatpush1.msra.mxu0 0.0
    %2071 = vmatprep.subr.mxu0 0.0
    %2072 = vmatpush1.msra.mxu0 0.0
    %2073 = vmatprep.subr.mxu0 0.0
    %2074 = vmatpush1.msra.mxu0 0.0
    %2075 = vmatprep.subr.mxu0 0.0
    %2076 = vmatpush1.msra.mxu0 0.0
    %2077 = vmatprep.subr.mxu0 0.0
    %2078 = vmatpush1.msra.mxu0 0.0
    %2079 = vmatprep.subr.mxu0 0.0
    %2080 = vmatpush1.msra.mxu0 0.0
    %2081 = vmatprep.subr.mxu0 0.0
    %2082 = vmatpush1.msra.mxu0 0.0
    %2083 = vmatprep.subr.mxu0 0.0
    %2084 = vmatpush1.msra.mxu0 0.0
    %2085 = vmatprep.subr.mxu0 0.0
    %2086 = vmatpush1.msra.mxu0 0.0
    %2087 = vmatprep.subr.mxu0 0.0
    %2088 = vmatpush1.msra.mxu0 0.0
    %2089 = vmatprep.subr.mxu0 0.0
    %2090 = vmatpush1.msra.mxu0 0.0
    %2091 = vmatprep.subr.mxu0 0.0
    %2092 = vmatpush1.msra.mxu0 0.0
    %2093 = vmatprep.subr.mxu0 0.0
    %2094 = vmatpush1.msra.mxu0 0.0
    %2095 = vmatprep.subr.mxu0 0.0
    %2096 = vmatpush1.msra.mxu0 0.0
    %2097 = vmatprep.subr.mxu0 0.0
    %2098 = vmatpush1.msra.mxu0 0.0
    %2099 = vmatprep.subr.mxu0 0.0
    %2100 = vmatpush1.msra.mxu0 0.0
    %2101 = vmatprep.subr.mxu0 0.0
    %2102 = vmatpush1.msra.mxu0 0.0
    %2103 = vmatprep.subr.mxu0 0.0
    %2104 = vmatpush1.msra.mxu0 0.0
    %2105 = vmatprep.subr.mxu0 0.0
    %2106 = vmatpush1.msra.mxu0 0.0
    %2107 = vmatprep.subr.mxu0 0.0
    %2108 = vmatpush1.msra.mxu0 0.0
    %2109 = vmatprep.subr.mxu0 0.0
    %2110 = vmatpush1.msra.mxu0 0.0
    %2111 = vmatprep.subr.mxu0 0.0
    %2112 = vmatpush1.msra.mxu0 0.0
    %2113 = vmatprep.subr.mxu0 0.0
    %2114 = vmatpush1.msra.mxu0 0.0
    %2115 = vmatprep.subr.mxu0 0.0
    %2116 = vmatpush1.msra.mxu0 0.0
    %2117 = vmatprep.mubr.f32.mxu0 0.0
    %2118 = vmatmul.mubr.f32.gmra.mrb[0].mxu0 %v2051
    %v2119 = vpop.f32.mrb[0].mxu0
    %v2120 = vadd.f32 0.0, %v2119
    %v2121 = vpop.f32.mrb[0].mxu0
    %2122 = vdwg.mxu0
    %v2131 = vrot.slane %v1586, 7
    %v2132 = vsel %vm1091, %v2131, %v1497
    %v2133 = vrot.slane %v1675, 6
    %v2134 = vsel %vm1093, %v2133, %v2132
    %v2135 = vrot.slane %v1764, 5
    %v2136 = vsel %vm1095, %v2135, %v2134
    %v2137 = vrot.slane %v1853, 4
    %v2138 = vsel %vm1097, %v2137, %v2136
    %v2139 = vrot.slane %v1942, 3
    %v2140 = vsel %vm1099, %v2139, %v2138
    %v2141 = vrot.slane %v2031, 2
    %v2142 = vsel %vm1101, %v2141, %v2140
    %v2143 = vrot.slane %v2120, 1
    %v2144 = vsel %vm1103, %v2143, %v2142
    %2146 = vst.msk [vmem:[#allocation8] sm:$0xff] %vm84, %v2144
    // Predicated region
    $region26: #{tpu_custom_call.1} parent=1 // pred_check
      _
    $region27: #{tpu_custom_call.1} parent=1 // pred_check_branch
      %2148 = sbr.rel (0) target = $region29
    $region28: #{tpu_custom_call.1} parent=1 // pred_region
      %s2150 = ssub.s32 128, 128
      %2151 = vsyncadd [#allocation4], %s2150
      %s2153 = sshll.u32 [#allocation8], 4
      %s2154 = int_to_ptr.vmem [resolvable:$true] %s2153
      %2156 = dma.vmem_to_hbm [thread:$0]  %s2154, 128, %s3, [#allocation4]
    $region29: #{tpu_custom_call.1} parent=1 // pred_fallthru
      _
    // Predicated region
    $region30: #{tpu_custom_call.1} parent=1 // pred_check
      _
    $region31: #{tpu_custom_call.1} parent=1 // pred_check_branch
      %2158 = sbr.rel (0) target = $region33
    $region32: #{tpu_custom_call.1} parent=1 // pred_region
      %2159 = dma.done [#allocation4], 128
    $region33: #{tpu_custom_call.1} parent=1 // pred_fallthru
      _
    %2160 = vsyncpa [#allocation3], 1
    %2161 = vsyncpa [#allocation6], 1
    %2162 = vsyncpa [#allocation4], 1

</llo_original>
